<compile_context>
chip_gen: v5e
topology: v5e:2x2
jax: 0.10.0
libtpu: 0.0.40
codegen_flags: <defaults>
</compile_context>

<pallas_src>
import jax
import jax.numpy as jnp
from jax.experimental import pallas as pl
from jax.experimental.pallas import tpu as pltpu

KH = KW = 3  # kernel_size=3, padding=1 (SAME)


def _conv_terms(c, h):
    """Static (kw, lane_delta) list for the diagonal terms of the lane-space conv
    operator.  Order must match the rows of the weight map built below."""
    terms = []
    for kw in range(KW):                       # W-direction tap (sublane shift)
        for s in range(-(c - 1), c):           # output -> input channel shift
            for dh in (-1, 0, 1):              # H-direction tap (lane shift)
                terms.append((kw, s * h + dh))
    return tuple(terms)


def _build_weight_tables(weight, bias, n, c, h):
    """Per-lane weight maps (one row per diagonal term) and a per-lane bias row.

    Lane index Lo = b*(c*h) + co*h + hh.  For term (kw, s, dh) the weight at lane Lo
    is W[co, co+s, dh+1, kw] when (co+s, hh+dh) are in range, else 0 -- SAME padding,
    channel-range and batch-boundary masks are folded into the weights, so the kernel
    needs no masking at all.  Depends only on the conv parameters (in a real module
    this would be precomputed once at init)."""
    l_total = n * c * h
    lane = jnp.arange(l_total)
    co = (lane // h) % c
    hh = lane % h
    rows = []
    for kw in range(KW):
        for s in range(-(c - 1), c):
            for dh in (-1, 0, 1):
                ci = co + s
                h_src = hh + dh
                valid = (ci >= 0) & (ci < c) & (h_src >= 0) & (h_src < h)
                w_val = weight[co, jnp.clip(ci, 0, c - 1), dh + 1, kw]
                rows.append(jnp.where(valid, w_val, 0.0))
    wmap = jnp.stack(rows, axis=0).astype(jnp.float32)       # (3*(2c-1)*3, L)
    bias_row = bias[co][None, :].astype(jnp.float32)         # (1, L)
    return wmap, bias_row


def _make_kernel(terms, pad, width, l_total):
    def kernel(xpad_ref, wmap_ref, brow_ref, o_ref):
        """xpad_ref: (W+2, lanes) VMEM  zero-bordered, lane-dense relaid input
           wmap_ref: (n_terms, L)  VMEM  per-lane conv weights (masks folded in)
           brow_ref: (1, L)        VMEM  per-lane bias
           o_ref:    (W, L)        VMEM  softmax(conv(x)) * x, lane-dense layout"""
        # ---- 3x3 conv + bias in the lane-dense (W, N*C*H) layout ----------------
        # The whole padded input is ~4.5 vregs, so Mosaic keeps it VMEM/register
        # resident; each tap is a static (unaligned) slice, each MAC is 2 vregs wide.
        z = brow_ref[...]                                    # (1, L) bias
        for idx, (kw, dlt) in enumerate(terms):
            start = pad + dlt                                # static slice offsets
            tap = xpad_ref[kw:kw + width, start:start + l_total]   # (W, L)
            z = z + wmap_ref[idx:idx + 1, :] * tap           # full-lane VPU MAC

        # ---- softmax over W (sublane axis 0)  ==  nn.Softmax(dim=-1) ------------
        m = jnp.max(z, axis=0, keepdims=True)                # (1, L)
        e = jnp.exp(z - m)                                   # EUP
        ssum = jnp.sum(e, axis=0, keepdims=True)             # (1, L)
        r = pl.reciprocal(ssum, approx=True)                 # EUP vrcp (idle slot)
        r = r * (2.0 - ssum * r)                             # 1 Newton step -> f32 acc

        # ---- x1 * x; x lives at rows [1, 1+W), lanes [pad, pad+L) ----------------
        x_t = xpad_ref[1:1 + width, pad:pad + l_total]       # (W, L)
        o_ref[...] = (e * r * x_t).astype(o_ref.dtype)       # full-width unmasked vst
    return kernel


def attention1_forward(x, weight, bias):
    """x: (N, Cin, H, W), weight: (Cout, Cin, 3, 3), bias: (Cout,).  Cout == Cin."""
    n, c, h, w = x.shape
    c_out = weight.shape[0]
    assert c_out == c, "x1 * x in the reference module requires Cout == Cin"

    l_total = n * c * h                      # lane extent (128 for the test shape)
    max_d = (c - 1) * h + 1                  # largest |lane delta| of any conv term
    pad = max_d                              # lane-axis guard band (zeros)
    lanes = ((pad + l_total + max_d + 127) // 128) * 128

    # Wrapper-side layout plumbing (review #1): transpose to (W, N*C*H) and add the
    # one-row W border + lane guard band inside the same tiny relayout (~18 KiB).
    x_t = jnp.transpose(x, (3, 0, 1, 2)).reshape(w, l_total).astype(jnp.float32)
    xpad = jnp.zeros((w + 2, lanes), jnp.float32)
    xpad = xpad.at[1:w + 1, pad:pad + l_total].set(x_t)

    wmap, bias_row = _build_weight_tables(
        weight.astype(jnp.float32), bias.astype(jnp.float32), n, c, h)
    terms = _conv_terms(c, h)

    kernel = _make_kernel(terms, pad, w, l_total)
    out_t = pl.pallas_call(
        kernel,
        out_shape=jax.ShapeDtypeStruct((w, l_total), x.dtype),
        in_specs=[
            pl.BlockSpec(memory_space=pltpu.MemorySpace.VMEM),   # relaid, bordered x
            pl.BlockSpec(memory_space=pltpu.MemorySpace.VMEM),   # per-lane weight maps
            pl.BlockSpec(memory_space=pltpu.MemorySpace.VMEM),   # per-lane bias row
        ],
        out_specs=pl.BlockSpec(memory_space=pltpu.MemorySpace.VMEM),
    )(xpad, wmap, bias_row)

    # Back to NCHW (layout plumbing).
    return jnp.transpose(out_t.reshape(w, n, c, h), (1, 2, 3, 0))


def attention1_reference(x, weight, bias):
    # precision=HIGHEST so the XLA conv is true f32 (matches the kernel's exact
    # f32 VPU accumulation); default precision may use bf16 MXU passes.
    y = jax.lax.conv_general_dilated(
        x, weight, window_strides=(1, 1), padding="SAME",
        dimension_numbers=("NCHW", "OIHW", "NCHW"),
        precision=jax.lax.Precision.HIGHEST,
    )
    y = y + bias[None, :, None, None]
    p = jax.nn.softmax(y, axis=-1)
    return p * x


if __name__ == "__main__":
    # Attention1(in_channels=4, out_channels=4); input x: (2, 4, 16, 16)  (NCHW)
    n, c, hh, ww = 2, 4, 16, 16

    key = jax.random.PRNGKey(0)
    kx, kw_, kb = jax.random.split(key, 3)

    x = jax.random.normal(kx, (n, c, hh, ww), dtype=jnp.float32)

    # deterministic init, PyTorch-conv-style uniform bound 1/sqrt(fan_in)
    fan_in = c * KH * KW
    bound = 1.0 / (fan_in ** 0.5)
    weight = jax.random.uniform(kw_, (c, c, KH, KW), jnp.float32, -bound, bound)
    bias = jax.random.uniform(kb, (c,), jnp.float32, -bound, bound)

    fwd = jax.jit(attention1_forward)
    out = jax.block_until_ready(fwd(x, weight, bias))

    ref = attention1_reference(x, weight, bias)
    assert out.shape == (n, c, hh, ww)
    assert jnp.allclose(out, ref, rtol=1e-5, atol=1e-5), "mismatch vs reference"

    print("KERNEL_OK")
</pallas_src>

<mosaic_0001>
module attributes {stable_mosaic.version = 11 : i64} {
  func.func @kernel(%arg0: memref<18x256xf32, #tpu.memory_space<vmem>>, %arg1: memref<63x128xf32, #tpu.memory_space<vmem>>, %arg2: memref<1x128xf32, #tpu.memory_space<vmem>>, %arg3: memref<16x128xf32, #tpu.memory_space<vmem>>) attributes {dimension_semantics = [], scalar_prefetch = 0 : i64, scratch_operands = 0 : i64, tpu.core_type = #tpu.core_type<tc>} {
    %c0 = arith.constant 0 : index
    %c0_0 = arith.constant 0 : index
    %0 = vector.load %arg2[%c0, %c0_0] : memref<1x128xf32, #tpu.memory_space<vmem>>, vector<1x128xf32>
    %c0_1 = arith.constant 0 : index
    %c0_2 = arith.constant 0 : index
    %1 = vector.load %arg0[%c0_1, %c0_2] : memref<18x256xf32, #tpu.memory_space<vmem>>, vector<16x128xf32>
    %c0_3 = arith.constant 0 : index
    %c0_4 = arith.constant 0 : index
    %2 = vector.load %arg1[%c0_3, %c0_4] : memref<63x128xf32, #tpu.memory_space<vmem>>, vector<1x128xf32>
    %3 = vector.broadcast %2 : vector<1x128xf32> to vector<16x128xf32>
    %4 = arith.mulf %3, %1 : vector<16x128xf32>
    %5 = vector.broadcast %0 : vector<1x128xf32> to vector<16x128xf32>
    %6 = arith.addf %5, %4 : vector<16x128xf32>
    %c0_5 = arith.constant 0 : index
    %c1 = arith.constant 1 : index
    %7 = vector.load %arg0[%c0_5, %c1] : memref<18x256xf32, #tpu.memory_space<vmem>>, vector<16x128xf32>
    %c1_6 = arith.constant 1 : index
    %c0_7 = arith.constant 0 : index
    %8 = vector.load %arg1[%c1_6, %c0_7] : memref<63x128xf32, #tpu.memory_space<vmem>>, vector<1x128xf32>
    %9 = vector.broadcast %8 : vector<1x128xf32> to vector<16x128xf32>
    %10 = arith.mulf %9, %7 : vector<16x128xf32>
    %11 = arith.addf %6, %10 : vector<16x128xf32>
    %c0_8 = arith.constant 0 : index
    %c2 = arith.constant 2 : index
    %12 = vector.load %arg0[%c0_8, %c2] : memref<18x256xf32, #tpu.memory_space<vmem>>, vector<16x128xf32>
    %c2_9 = arith.constant 2 : index
    %c0_10 = arith.constant 0 : index
    %13 = vector.load %arg1[%c2_9, %c0_10] : memref<63x128xf32, #tpu.memory_space<vmem>>, vector<1x128xf32>
    %14 = vector.broadcast %13 : vector<1x128xf32> to vector<16x128xf32>
    %15 = arith.mulf %14, %12 : vector<16x128xf32>
    %16 = arith.addf %11, %15 : vector<16x128xf32>
    %c0_11 = arith.constant 0 : index
    %c16 = arith.constant 16 : index
    %17 = vector.load %arg0[%c0_11, %c16] : memref<18x256xf32, #tpu.memory_space<vmem>>, vector<16x128xf32>
    %c3 = arith.constant 3 : index
    %c0_12 = arith.constant 0 : index
    %18 = vector.load %arg1[%c3, %c0_12] : memref<63x128xf32, #tpu.memory_space<vmem>>, vector<1x128xf32>
    %19 = vector.broadcast %18 : vector<1x128xf32> to vector<16x128xf32>
    %20 = arith.mulf %19, %17 : vector<16x128xf32>
    %21 = arith.addf %16, %20 : vector<16x128xf32>
    %c0_13 = arith.constant 0 : index
    %c17 = arith.constant 17 : index
    %22 = vector.load %arg0[%c0_13, %c17] : memref<18x256xf32, #tpu.memory_space<vmem>>, vector<16x128xf32>
    %c4 = arith.constant 4 : index
    %c0_14 = arith.constant 0 : index
    %23 = vector.load %arg1[%c4, %c0_14] : memref<63x128xf32, #tpu.memory_space<vmem>>, vector<1x128xf32>
    %24 = vector.broadcast %23 : vector<1x128xf32> to vector<16x128xf32>
    %25 = arith.mulf %24, %22 : vector<16x128xf32>
    %26 = arith.addf %21, %25 : vector<16x128xf32>
    %c0_15 = arith.constant 0 : index
    %c18 = arith.constant 18 : index
    %27 = vector.load %arg0[%c0_15, %c18] : memref<18x256xf32, #tpu.memory_space<vmem>>, vector<16x128xf32>
    %c5 = arith.constant 5 : index
    %c0_16 = arith.constant 0 : index
    %28 = vector.load %arg1[%c5, %c0_16] : memref<63x128xf32, #tpu.memory_space<vmem>>, vector<1x128xf32>
    %29 = vector.broadcast %28 : vector<1x128xf32> to vector<16x128xf32>
    %30 = arith.mulf %29, %27 : vector<16x128xf32>
    %31 = arith.addf %26, %30 : vector<16x128xf32>
    %c0_17 = arith.constant 0 : index
    %c32 = arith.constant 32 : index
    %32 = vector.load %arg0[%c0_17, %c32] : memref<18x256xf32, #tpu.memory_space<vmem>>, vector<16x128xf32>
    %c6 = arith.constant 6 : index
    %c0_18 = arith.constant 0 : index
    %33 = vector.load %arg1[%c6, %c0_18] : memref<63x128xf32, #tpu.memory_space<vmem>>, vector<1x128xf32>
    %34 = vector.broadcast %33 : vector<1x128xf32> to vector<16x128xf32>
    %35 = arith.mulf %34, %32 : vector<16x128xf32>
    %36 = arith.addf %31, %35 : vector<16x128xf32>
    %c0_19 = arith.constant 0 : index
    %c33 = arith.constant 33 : index
    %37 = vector.load %arg0[%c0_19, %c33] : memref<18x256xf32, #tpu.memory_space<vmem>>, vector<16x128xf32>
    %c7 = arith.constant 7 : index
    %c0_20 = arith.constant 0 : index
    %38 = vector.load %arg1[%c7, %c0_20] : memref<63x128xf32, #tpu.memory_space<vmem>>, vector<1x128xf32>
    %39 = vector.broadcast %38 : vector<1x128xf32> to vector<16x128xf32>
    %40 = arith.mulf %39, %37 : vector<16x128xf32>
    %41 = arith.addf %36, %40 : vector<16x128xf32>
    %c0_21 = arith.constant 0 : index
    %c34 = arith.constant 34 : index
    %42 = vector.load %arg0[%c0_21, %c34] : memref<18x256xf32, #tpu.memory_space<vmem>>, vector<16x128xf32>
    %c8 = arith.constant 8 : index
    %c0_22 = arith.constant 0 : index
    %43 = vector.load %arg1[%c8, %c0_22] : memref<63x128xf32, #tpu.memory_space<vmem>>, vector<1x128xf32>
    %44 = vector.broadcast %43 : vector<1x128xf32> to vector<16x128xf32>
    %45 = arith.mulf %44, %42 : vector<16x128xf32>
    %46 = arith.addf %41, %45 : vector<16x128xf32>
    %c0_23 = arith.constant 0 : index
    %c48 = arith.constant 48 : index
    %47 = vector.load %arg0[%c0_23, %c48] : memref<18x256xf32, #tpu.memory_space<vmem>>, vector<16x128xf32>
    %c9 = arith.constant 9 : index
    %c0_24 = arith.constant 0 : index
    %48 = vector.load %arg1[%c9, %c0_24] : memref<63x128xf32, #tpu.memory_space<vmem>>, vector<1x128xf32>
    %49 = vector.broadcast %48 : vector<1x128xf32> to vector<16x128xf32>
    %50 = arith.mulf %49, %47 : vector<16x128xf32>
    %51 = arith.addf %46, %50 : vector<16x128xf32>
    %c0_25 = arith.constant 0 : index
    %c49 = arith.constant 49 : index
    %52 = vector.load %arg0[%c0_25, %c49] : memref<18x256xf32, #tpu.memory_space<vmem>>, vector<16x128xf32>
    %c10 = arith.constant 10 : index
    %c0_26 = arith.constant 0 : index
    %53 = vector.load %arg1[%c10, %c0_26] : memref<63x128xf32, #tpu.memory_space<vmem>>, vector<1x128xf32>
    %54 = vector.broadcast %53 : vector<1x128xf32> to vector<16x128xf32>
    %55 = arith.mulf %54, %52 : vector<16x128xf32>
    %56 = arith.addf %51, %55 : vector<16x128xf32>
    %c0_27 = arith.constant 0 : index
    %c50 = arith.constant 50 : index
    %57 = vector.load %arg0[%c0_27, %c50] : memref<18x256xf32, #tpu.memory_space<vmem>>, vector<16x128xf32>
    %c11 = arith.constant 11 : index
    %c0_28 = arith.constant 0 : index
    %58 = vector.load %arg1[%c11, %c0_28] : memref<63x128xf32, #tpu.memory_space<vmem>>, vector<1x128xf32>
    %59 = vector.broadcast %58 : vector<1x128xf32> to vector<16x128xf32>
    %60 = arith.mulf %59, %57 : vector<16x128xf32>
    %61 = arith.addf %56, %60 : vector<16x128xf32>
    %c0_29 = arith.constant 0 : index
    %c64 = arith.constant 64 : index
    %62 = vector.load %arg0[%c0_29, %c64] : memref<18x256xf32, #tpu.memory_space<vmem>>, vector<16x128xf32>
    %c12 = arith.constant 12 : index
    %c0_30 = arith.constant 0 : index
    %63 = vector.load %arg1[%c12, %c0_30] : memref<63x128xf32, #tpu.memory_space<vmem>>, vector<1x128xf32>
    %64 = vector.broadcast %63 : vector<1x128xf32> to vector<16x128xf32>
    %65 = arith.mulf %64, %62 : vector<16x128xf32>
    %66 = arith.addf %61, %65 : vector<16x128xf32>
    %c0_31 = arith.constant 0 : index
    %c65 = arith.constant 65 : index
    %67 = vector.load %arg0[%c0_31, %c65] : memref<18x256xf32, #tpu.memory_space<vmem>>, vector<16x128xf32>
    %c13 = arith.constant 13 : index
    %c0_32 = arith.constant 0 : index
    %68 = vector.load %arg1[%c13, %c0_32] : memref<63x128xf32, #tpu.memory_space<vmem>>, vector<1x128xf32>
    %69 = vector.broadcast %68 : vector<1x128xf32> to vector<16x128xf32>
    %70 = arith.mulf %69, %67 : vector<16x128xf32>
    %71 = arith.addf %66, %70 : vector<16x128xf32>
    %c0_33 = arith.constant 0 : index
    %c66 = arith.constant 66 : index
    %72 = vector.load %arg0[%c0_33, %c66] : memref<18x256xf32, #tpu.memory_space<vmem>>, vector<16x128xf32>
    %c14 = arith.constant 14 : index
    %c0_34 = arith.constant 0 : index
    %73 = vector.load %arg1[%c14, %c0_34] : memref<63x128xf32, #tpu.memory_space<vmem>>, vector<1x128xf32>
    %74 = vector.broadcast %73 : vector<1x128xf32> to vector<16x128xf32>
    %75 = arith.mulf %74, %72 : vector<16x128xf32>
    %76 = arith.addf %71, %75 : vector<16x128xf32>
    %c0_35 = arith.constant 0 : index
    %c80 = arith.constant 80 : index
    %77 = vector.load %arg0[%c0_35, %c80] : memref<18x256xf32, #tpu.memory_space<vmem>>, vector<16x128xf32>
    %c15 = arith.constant 15 : index
    %c0_36 = arith.constant 0 : index
    %78 = vector.load %arg1[%c15, %c0_36] : memref<63x128xf32, #tpu.memory_space<vmem>>, vector<1x128xf32>
    %79 = vector.broadcast %78 : vector<1x128xf32> to vector<16x128xf32>
    %80 = arith.mulf %79, %77 : vector<16x128xf32>
    %81 = arith.addf %76, %80 : vector<16x128xf32>
    %c0_37 = arith.constant 0 : index
    %c81 = arith.constant 81 : index
    %82 = vector.load %arg0[%c0_37, %c81] : memref<18x256xf32, #tpu.memory_space<vmem>>, vector<16x128xf32>
    %c16_38 = arith.constant 16 : index
    %c0_39 = arith.constant 0 : index
    %83 = vector.load %arg1[%c16_38, %c0_39] : memref<63x128xf32, #tpu.memory_space<vmem>>, vector<1x128xf32>
    %84 = vector.broadcast %83 : vector<1x128xf32> to vector<16x128xf32>
    %85 = arith.mulf %84, %82 : vector<16x128xf32>
    %86 = arith.addf %81, %85 : vector<16x128xf32>
    %c0_40 = arith.constant 0 : index
    %c82 = arith.constant 82 : index
    %87 = vector.load %arg0[%c0_40, %c82] : memref<18x256xf32, #tpu.memory_space<vmem>>, vector<16x128xf32>
    %c17_41 = arith.constant 17 : index
    %c0_42 = arith.constant 0 : index
    %88 = vector.load %arg1[%c17_41, %c0_42] : memref<63x128xf32, #tpu.memory_space<vmem>>, vector<1x128xf32>
    %89 = vector.broadcast %88 : vector<1x128xf32> to vector<16x128xf32>
    %90 = arith.mulf %89, %87 : vector<16x128xf32>
    %91 = arith.addf %86, %90 : vector<16x128xf32>
    %c0_43 = arith.constant 0 : index
    %c96 = arith.constant 96 : index
    %92 = vector.load %arg0[%c0_43, %c96] : memref<18x256xf32, #tpu.memory_space<vmem>>, vector<16x128xf32>
    %c18_44 = arith.constant 18 : index
    %c0_45 = arith.constant 0 : index
    %93 = vector.load %arg1[%c18_44, %c0_45] : memref<63x128xf32, #tpu.memory_space<vmem>>, vector<1x128xf32>
    %94 = vector.broadcast %93 : vector<1x128xf32> to vector<16x128xf32>
    %95 = arith.mulf %94, %92 : vector<16x128xf32>
    %96 = arith.addf %91, %95 : vector<16x128xf32>
    %c0_46 = arith.constant 0 : index
    %c97 = arith.constant 97 : index
    %97 = vector.load %arg0[%c0_46, %c97] : memref<18x256xf32, #tpu.memory_space<vmem>>, vector<16x128xf32>
    %c19 = arith.constant 19 : index
    %c0_47 = arith.constant 0 : index
    %98 = vector.load %arg1[%c19, %c0_47] : memref<63x128xf32, #tpu.memory_space<vmem>>, vector<1x128xf32>
    %99 = vector.broadcast %98 : vector<1x128xf32> to vector<16x128xf32>
    %100 = arith.mulf %99, %97 : vector<16x128xf32>
    %101 = arith.addf %96, %100 : vector<16x128xf32>
    %c0_48 = arith.constant 0 : index
    %c98 = arith.constant 98 : index
    %102 = vector.load %arg0[%c0_48, %c98] : memref<18x256xf32, #tpu.memory_space<vmem>>, vector<16x128xf32>
    %c20 = arith.constant 20 : index
    %c0_49 = arith.constant 0 : index
    %103 = vector.load %arg1[%c20, %c0_49] : memref<63x128xf32, #tpu.memory_space<vmem>>, vector<1x128xf32>
    %104 = vector.broadcast %103 : vector<1x128xf32> to vector<16x128xf32>
    %105 = arith.mulf %104, %102 : vector<16x128xf32>
    %106 = arith.addf %101, %105 : vector<16x128xf32>
    %c1_50 = arith.constant 1 : index
    %c0_51 = arith.constant 0 : index
    %107 = vector.load %arg0[%c1_50, %c0_51] : memref<18x256xf32, #tpu.memory_space<vmem>>, vector<16x128xf32>
    %c21 = arith.constant 21 : index
    %c0_52 = arith.constant 0 : index
    %108 = vector.load %arg1[%c21, %c0_52] : memref<63x128xf32, #tpu.memory_space<vmem>>, vector<1x128xf32>
    %109 = vector.broadcast %108 : vector<1x128xf32> to vector<16x128xf32>
    %110 = arith.mulf %109, %107 : vector<16x128xf32>
    %111 = arith.addf %106, %110 : vector<16x128xf32>
    %c1_53 = arith.constant 1 : index
    %c1_54 = arith.constant 1 : index
    %112 = vector.load %arg0[%c1_53, %c1_54] : memref<18x256xf32, #tpu.memory_space<vmem>>, vector<16x128xf32>
    %c22 = arith.constant 22 : index
    %c0_55 = arith.constant 0 : index
    %113 = vector.load %arg1[%c22, %c0_55] : memref<63x128xf32, #tpu.memory_space<vmem>>, vector<1x128xf32>
    %114 = vector.broadcast %113 : vector<1x128xf32> to vector<16x128xf32>
    %115 = arith.mulf %114, %112 : vector<16x128xf32>
    %116 = arith.addf %111, %115 : vector<16x128xf32>
    %c1_56 = arith.constant 1 : index
    %c2_57 = arith.constant 2 : index
    %117 = vector.load %arg0[%c1_56, %c2_57] : memref<18x256xf32, #tpu.memory_space<vmem>>, vector<16x128xf32>
    %c23 = arith.constant 23 : index
    %c0_58 = arith.constant 0 : index
    %118 = vector.load %arg1[%c23, %c0_58] : memref<63x128xf32, #tpu.memory_space<vmem>>, vector<1x128xf32>
    %119 = vector.broadcast %118 : vector<1x128xf32> to vector<16x128xf32>
    %120 = arith.mulf %119, %117 : vector<16x128xf32>
    %121 = arith.addf %116, %120 : vector<16x128xf32>
    %c1_59 = arith.constant 1 : index
    %c16_60 = arith.constant 16 : index
    %122 = vector.load %arg0[%c1_59, %c16_60] : memref<18x256xf32, #tpu.memory_space<vmem>>, vector<16x128xf32>
    %c24 = arith.constant 24 : index
    %c0_61 = arith.constant 0 : index
    %123 = vector.load %arg1[%c24, %c0_61] : memref<63x128xf32, #tpu.memory_space<vmem>>, vector<1x128xf32>
    %124 = vector.broadcast %123 : vector<1x128xf32> to vector<16x128xf32>
    %125 = arith.mulf %124, %122 : vector<16x128xf32>
    %126 = arith.addf %121, %125 : vector<16x128xf32>
    %c1_62 = arith.constant 1 : index
    %c17_63 = arith.constant 17 : index
    %127 = vector.load %arg0[%c1_62, %c17_63] : memref<18x256xf32, #tpu.memory_space<vmem>>, vector<16x128xf32>
    %c25 = arith.constant 25 : index
    %c0_64 = arith.constant 0 : index
    %128 = vector.load %arg1[%c25, %c0_64] : memref<63x128xf32, #tpu.memory_space<vmem>>, vector<1x128xf32>
    %129 = vector.broadcast %128 : vector<1x128xf32> to vector<16x128xf32>
    %130 = arith.mulf %129, %127 : vector<16x128xf32>
    %131 = arith.addf %126, %130 : vector<16x128xf32>
    %c1_65 = arith.constant 1 : index
    %c18_66 = arith.constant 18 : index
    %132 = vector.load %arg0[%c1_65, %c18_66] : memref<18x256xf32, #tpu.memory_space<vmem>>, vector<16x128xf32>
    %c26 = arith.constant 26 : index
    %c0_67 = arith.constant 0 : index
    %133 = vector.load %arg1[%c26, %c0_67] : memref<63x128xf32, #tpu.memory_space<vmem>>, vector<1x128xf32>
    %134 = vector.broadcast %133 : vector<1x128xf32> to vector<16x128xf32>
    %135 = arith.mulf %134, %132 : vector<16x128xf32>
    %136 = arith.addf %131, %135 : vector<16x128xf32>
    %c1_68 = arith.constant 1 : index
    %c32_69 = arith.constant 32 : index
    %137 = vector.load %arg0[%c1_68, %c32_69] : memref<18x256xf32, #tpu.memory_space<vmem>>, vector<16x128xf32>
    %c27 = arith.constant 27 : index
    %c0_70 = arith.constant 0 : index
    %138 = vector.load %arg1[%c27, %c0_70] : memref<63x128xf32, #tpu.memory_space<vmem>>, vector<1x128xf32>
    %139 = vector.broadcast %138 : vector<1x128xf32> to vector<16x128xf32>
    %140 = arith.mulf %139, %137 : vector<16x128xf32>
    %141 = arith.addf %136, %140 : vector<16x128xf32>
    %c1_71 = arith.constant 1 : index
    %c33_72 = arith.constant 33 : index
    %142 = vector.load %arg0[%c1_71, %c33_72] : memref<18x256xf32, #tpu.memory_space<vmem>>, vector<16x128xf32>
    %c28 = arith.constant 28 : index
    %c0_73 = arith.constant 0 : index
    %143 = vector.load %arg1[%c28, %c0_73] : memref<63x128xf32, #tpu.memory_space<vmem>>, vector<1x128xf32>
    %144 = vector.broadcast %143 : vector<1x128xf32> to vector<16x128xf32>
    %145 = arith.mulf %144, %142 : vector<16x128xf32>
    %146 = arith.addf %141, %145 : vector<16x128xf32>
    %c1_74 = arith.constant 1 : index
    %c34_75 = arith.constant 34 : index
    %147 = vector.load %arg0[%c1_74, %c34_75] : memref<18x256xf32, #tpu.memory_space<vmem>>, vector<16x128xf32>
    %c29 = arith.constant 29 : index
    %c0_76 = arith.constant 0 : index
    %148 = vector.load %arg1[%c29, %c0_76] : memref<63x128xf32, #tpu.memory_space<vmem>>, vector<1x128xf32>
    %149 = vector.broadcast %148 : vector<1x128xf32> to vector<16x128xf32>
    %150 = arith.mulf %149, %147 : vector<16x128xf32>
    %151 = arith.addf %146, %150 : vector<16x128xf32>
    %c1_77 = arith.constant 1 : index
    %c48_78 = arith.constant 48 : index
    %152 = vector.load %arg0[%c1_77, %c48_78] : memref<18x256xf32, #tpu.memory_space<vmem>>, vector<16x128xf32>
    %c30 = arith.constant 30 : index
    %c0_79 = arith.constant 0 : index
    %153 = vector.load %arg1[%c30, %c0_79] : memref<63x128xf32, #tpu.memory_space<vmem>>, vector<1x128xf32>
    %154 = vector.broadcast %153 : vector<1x128xf32> to vector<16x128xf32>
    %155 = arith.mulf %154, %152 : vector<16x128xf32>
    %156 = arith.addf %151, %155 : vector<16x128xf32>
    %c1_80 = arith.constant 1 : index
    %c49_81 = arith.constant 49 : index
    %157 = vector.load %arg0[%c1_80, %c49_81] : memref<18x256xf32, #tpu.memory_space<vmem>>, vector<16x128xf32>
    %c31 = arith.constant 31 : index
    %c0_82 = arith.constant 0 : index
    %158 = vector.load %arg1[%c31, %c0_82] : memref<63x128xf32, #tpu.memory_space<vmem>>, vector<1x128xf32>
    %159 = vector.broadcast %158 : vector<1x128xf32> to vector<16x128xf32>
    %160 = arith.mulf %159, %157 : vector<16x128xf32>
    %161 = arith.addf %156, %160 : vector<16x128xf32>
    %c1_83 = arith.constant 1 : index
    %c50_84 = arith.constant 50 : index
    %162 = vector.load %arg0[%c1_83, %c50_84] : memref<18x256xf32, #tpu.memory_space<vmem>>, vector<16x128xf32>
    %c32_85 = arith.constant 32 : index
    %c0_86 = arith.constant 0 : index
    %163 = vector.load %arg1[%c32_85, %c0_86] : memref<63x128xf32, #tpu.memory_space<vmem>>, vector<1x128xf32>
    %164 = vector.broadcast %163 : vector<1x128xf32> to vector<16x128xf32>
    %165 = arith.mulf %164, %162 : vector<16x128xf32>
    %166 = arith.addf %161, %165 : vector<16x128xf32>
    %c1_87 = arith.constant 1 : index
    %c64_88 = arith.constant 64 : index
    %167 = vector.load %arg0[%c1_87, %c64_88] : memref<18x256xf32, #tpu.memory_space<vmem>>, vector<16x128xf32>
    %c33_89 = arith.constant 33 : index
    %c0_90 = arith.constant 0 : index
    %168 = vector.load %arg1[%c33_89, %c0_90] : memref<63x128xf32, #tpu.memory_space<vmem>>, vector<1x128xf32>
    %169 = vector.broadcast %168 : vector<1x128xf32> to vector<16x128xf32>
    %170 = arith.mulf %169, %167 : vector<16x128xf32>
    %171 = arith.addf %166, %170 : vector<16x128xf32>
    %c1_91 = arith.constant 1 : index
    %c65_92 = arith.constant 65 : index
    %172 = vector.load %arg0[%c1_91, %c65_92] : memref<18x256xf32, #tpu.memory_space<vmem>>, vector<16x128xf32>
    %c34_93 = arith.constant 34 : index
    %c0_94 = arith.constant 0 : index
    %173 = vector.load %arg1[%c34_93, %c0_94] : memref<63x128xf32, #tpu.memory_space<vmem>>, vector<1x128xf32>
    %174 = vector.broadcast %173 : vector<1x128xf32> to vector<16x128xf32>
    %175 = arith.mulf %174, %172 : vector<16x128xf32>
    %176 = arith.addf %171, %175 : vector<16x128xf32>
    %c1_95 = arith.constant 1 : index
    %c66_96 = arith.constant 66 : index
    %177 = vector.load %arg0[%c1_95, %c66_96] : memref<18x256xf32, #tpu.memory_space<vmem>>, vector<16x128xf32>
    %c35 = arith.constant 35 : index
    %c0_97 = arith.constant 0 : index
    %178 = vector.load %arg1[%c35, %c0_97] : memref<63x128xf32, #tpu.memory_space<vmem>>, vector<1x128xf32>
    %179 = vector.broadcast %178 : vector<1x128xf32> to vector<16x128xf32>
    %180 = arith.mulf %179, %177 : vector<16x128xf32>
    %181 = arith.addf %176, %180 : vector<16x128xf32>
    %c1_98 = arith.constant 1 : index
    %c80_99 = arith.constant 80 : index
    %182 = vector.load %arg0[%c1_98, %c80_99] : memref<18x256xf32, #tpu.memory_space<vmem>>, vector<16x128xf32>
    %c36 = arith.constant 36 : index
    %c0_100 = arith.constant 0 : index
    %183 = vector.load %arg1[%c36, %c0_100] : memref<63x128xf32, #tpu.memory_space<vmem>>, vector<1x128xf32>
    %184 = vector.broadcast %183 : vector<1x128xf32> to vector<16x128xf32>
    %185 = arith.mulf %184, %182 : vector<16x128xf32>
    %186 = arith.addf %181, %185 : vector<16x128xf32>
    %c1_101 = arith.constant 1 : index
    %c81_102 = arith.constant 81 : index
    %187 = vector.load %arg0[%c1_101, %c81_102] : memref<18x256xf32, #tpu.memory_space<vmem>>, vector<16x128xf32>
    %c37 = arith.constant 37 : index
    %c0_103 = arith.constant 0 : index
    %188 = vector.load %arg1[%c37, %c0_103] : memref<63x128xf32, #tpu.memory_space<vmem>>, vector<1x128xf32>
    %189 = vector.broadcast %188 : vector<1x128xf32> to vector<16x128xf32>
    %190 = arith.mulf %189, %187 : vector<16x128xf32>
    %191 = arith.addf %186, %190 : vector<16x128xf32>
    %c1_104 = arith.constant 1 : index
    %c82_105 = arith.constant 82 : index
    %192 = vector.load %arg0[%c1_104, %c82_105] : memref<18x256xf32, #tpu.memory_space<vmem>>, vector<16x128xf32>
    %c38 = arith.constant 38 : index
    %c0_106 = arith.constant 0 : index
    %193 = vector.load %arg1[%c38, %c0_106] : memref<63x128xf32, #tpu.memory_space<vmem>>, vector<1x128xf32>
    %194 = vector.broadcast %193 : vector<1x128xf32> to vector<16x128xf32>
    %195 = arith.mulf %194, %192 : vector<16x128xf32>
    %196 = arith.addf %191, %195 : vector<16x128xf32>
    %c1_107 = arith.constant 1 : index
    %c96_108 = arith.constant 96 : index
    %197 = vector.load %arg0[%c1_107, %c96_108] : memref<18x256xf32, #tpu.memory_space<vmem>>, vector<16x128xf32>
    %c39 = arith.constant 39 : index
    %c0_109 = arith.constant 0 : index
    %198 = vector.load %arg1[%c39, %c0_109] : memref<63x128xf32, #tpu.memory_space<vmem>>, vector<1x128xf32>
    %199 = vector.broadcast %198 : vector<1x128xf32> to vector<16x128xf32>
    %200 = arith.mulf %199, %197 : vector<16x128xf32>
    %201 = arith.addf %196, %200 : vector<16x128xf32>
    %c1_110 = arith.constant 1 : index
    %c97_111 = arith.constant 97 : index
    %202 = vector.load %arg0[%c1_110, %c97_111] : memref<18x256xf32, #tpu.memory_space<vmem>>, vector<16x128xf32>
    %c40 = arith.constant 40 : index
    %c0_112 = arith.constant 0 : index
    %203 = vector.load %arg1[%c40, %c0_112] : memref<63x128xf32, #tpu.memory_space<vmem>>, vector<1x128xf32>
    %204 = vector.broadcast %203 : vector<1x128xf32> to vector<16x128xf32>
    %205 = arith.mulf %204, %202 : vector<16x128xf32>
    %206 = arith.addf %201, %205 : vector<16x128xf32>
    %c1_113 = arith.constant 1 : index
    %c98_114 = arith.constant 98 : index
    %207 = vector.load %arg0[%c1_113, %c98_114] : memref<18x256xf32, #tpu.memory_space<vmem>>, vector<16x128xf32>
    %c41 = arith.constant 41 : index
    %c0_115 = arith.constant 0 : index
    %208 = vector.load %arg1[%c41, %c0_115] : memref<63x128xf32, #tpu.memory_space<vmem>>, vector<1x128xf32>
    %209 = vector.broadcast %208 : vector<1x128xf32> to vector<16x128xf32>
    %210 = arith.mulf %209, %207 : vector<16x128xf32>
    %211 = arith.addf %206, %210 : vector<16x128xf32>
    %c2_116 = arith.constant 2 : index
    %c0_117 = arith.constant 0 : index
    %212 = vector.load %arg0[%c2_116, %c0_117] : memref<18x256xf32, #tpu.memory_space<vmem>>, vector<16x128xf32>
    %c42 = arith.constant 42 : index
    %c0_118 = arith.constant 0 : index
    %213 = vector.load %arg1[%c42, %c0_118] : memref<63x128xf32, #tpu.memory_space<vmem>>, vector<1x128xf32>
    %214 = vector.broadcast %213 : vector<1x128xf32> to vector<16x128xf32>
    %215 = arith.mulf %214, %212 : vector<16x128xf32>
    %216 = arith.addf %211, %215 : vector<16x128xf32>
    %c2_119 = arith.constant 2 : index
    %c1_120 = arith.constant 1 : index
    %217 = vector.load %arg0[%c2_119, %c1_120] : memref<18x256xf32, #tpu.memory_space<vmem>>, vector<16x128xf32>
    %c43 = arith.constant 43 : index
    %c0_121 = arith.constant 0 : index
    %218 = vector.load %arg1[%c43, %c0_121] : memref<63x128xf32, #tpu.memory_space<vmem>>, vector<1x128xf32>
    %219 = vector.broadcast %218 : vector<1x128xf32> to vector<16x128xf32>
    %220 = arith.mulf %219, %217 : vector<16x128xf32>
    %221 = arith.addf %216, %220 : vector<16x128xf32>
    %c2_122 = arith.constant 2 : index
    %c2_123 = arith.constant 2 : index
    %222 = vector.load %arg0[%c2_122, %c2_123] : memref<18x256xf32, #tpu.memory_space<vmem>>, vector<16x128xf32>
    %c44 = arith.constant 44 : index
    %c0_124 = arith.constant 0 : index
    %223 = vector.load %arg1[%c44, %c0_124] : memref<63x128xf32, #tpu.memory_space<vmem>>, vector<1x128xf32>
    %224 = vector.broadcast %223 : vector<1x128xf32> to vector<16x128xf32>
    %225 = arith.mulf %224, %222 : vector<16x128xf32>
    %226 = arith.addf %221, %225 : vector<16x128xf32>
    %c2_125 = arith.constant 2 : index
    %c16_126 = arith.constant 16 : index
    %227 = vector.load %arg0[%c2_125, %c16_126] : memref<18x256xf32, #tpu.memory_space<vmem>>, vector<16x128xf32>
    %c45 = arith.constant 45 : index
    %c0_127 = arith.constant 0 : index
    %228 = vector.load %arg1[%c45, %c0_127] : memref<63x128xf32, #tpu.memory_space<vmem>>, vector<1x128xf32>
    %229 = vector.broadcast %228 : vector<1x128xf32> to vector<16x128xf32>
    %230 = arith.mulf %229, %227 : vector<16x128xf32>
    %231 = arith.addf %226, %230 : vector<16x128xf32>
    %c2_128 = arith.constant 2 : index
    %c17_129 = arith.constant 17 : index
    %232 = vector.load %arg0[%c2_128, %c17_129] : memref<18x256xf32, #tpu.memory_space<vmem>>, vector<16x128xf32>
    %c46 = arith.constant 46 : index
    %c0_130 = arith.constant 0 : index
    %233 = vector.load %arg1[%c46, %c0_130] : memref<63x128xf32, #tpu.memory_space<vmem>>, vector<1x128xf32>
    %234 = vector.broadcast %233 : vector<1x128xf32> to vector<16x128xf32>
    %235 = arith.mulf %234, %232 : vector<16x128xf32>
    %236 = arith.addf %231, %235 : vector<16x128xf32>
    %c2_131 = arith.constant 2 : index
    %c18_132 = arith.constant 18 : index
    %237 = vector.load %arg0[%c2_131, %c18_132] : memref<18x256xf32, #tpu.memory_space<vmem>>, vector<16x128xf32>
    %c47 = arith.constant 47 : index
    %c0_133 = arith.constant 0 : index
    %238 = vector.load %arg1[%c47, %c0_133] : memref<63x128xf32, #tpu.memory_space<vmem>>, vector<1x128xf32>
    %239 = vector.broadcast %238 : vector<1x128xf32> to vector<16x128xf32>
    %240 = arith.mulf %239, %237 : vector<16x128xf32>
    %241 = arith.addf %236, %240 : vector<16x128xf32>
    %c2_134 = arith.constant 2 : index
    %c32_135 = arith.constant 32 : index
    %242 = vector.load %arg0[%c2_134, %c32_135] : memref<18x256xf32, #tpu.memory_space<vmem>>, vector<16x128xf32>
    %c48_136 = arith.constant 48 : index
    %c0_137 = arith.constant 0 : index
    %243 = vector.load %arg1[%c48_136, %c0_137] : memref<63x128xf32, #tpu.memory_space<vmem>>, vector<1x128xf32>
    %244 = vector.broadcast %243 : vector<1x128xf32> to vector<16x128xf32>
    %245 = arith.mulf %244, %242 : vector<16x128xf32>
    %246 = arith.addf %241, %245 : vector<16x128xf32>
    %c2_138 = arith.constant 2 : index
    %c33_139 = arith.constant 33 : index
    %247 = vector.load %arg0[%c2_138, %c33_139] : memref<18x256xf32, #tpu.memory_space<vmem>>, vector<16x128xf32>
    %c49_140 = arith.constant 49 : index
    %c0_141 = arith.constant 0 : index
    %248 = vector.load %arg1[%c49_140, %c0_141] : memref<63x128xf32, #tpu.memory_space<vmem>>, vector<1x128xf32>
    %249 = vector.broadcast %248 : vector<1x128xf32> to vector<16x128xf32>
    %250 = arith.mulf %249, %247 : vector<16x128xf32>
    %251 = arith.addf %246, %250 : vector<16x128xf32>
    %c2_142 = arith.constant 2 : index
    %c34_143 = arith.constant 34 : index
    %252 = vector.load %arg0[%c2_142, %c34_143] : memref<18x256xf32, #tpu.memory_space<vmem>>, vector<16x128xf32>
    %c50_144 = arith.constant 50 : index
    %c0_145 = arith.constant 0 : index
    %253 = vector.load %arg1[%c50_144, %c0_145] : memref<63x128xf32, #tpu.memory_space<vmem>>, vector<1x128xf32>
    %254 = vector.broadcast %253 : vector<1x128xf32> to vector<16x128xf32>
    %255 = arith.mulf %254, %252 : vector<16x128xf32>
    %256 = arith.addf %251, %255 : vector<16x128xf32>
    %c2_146 = arith.constant 2 : index
    %c48_147 = arith.constant 48 : index
    %257 = vector.load %arg0[%c2_146, %c48_147] : memref<18x256xf32, #tpu.memory_space<vmem>>, vector<16x128xf32>
    %c51 = arith.constant 51 : index
    %c0_148 = arith.constant 0 : index
    %258 = vector.load %arg1[%c51, %c0_148] : memref<63x128xf32, #tpu.memory_space<vmem>>, vector<1x128xf32>
    %259 = vector.broadcast %258 : vector<1x128xf32> to vector<16x128xf32>
    %260 = arith.mulf %259, %257 : vector<16x128xf32>
    %261 = arith.addf %256, %260 : vector<16x128xf32>
    %c2_149 = arith.constant 2 : index
    %c49_150 = arith.constant 49 : index
    %262 = vector.load %arg0[%c2_149, %c49_150] : memref<18x256xf32, #tpu.memory_space<vmem>>, vector<16x128xf32>
    %c52 = arith.constant 52 : index
    %c0_151 = arith.constant 0 : index
    %263 = vector.load %arg1[%c52, %c0_151] : memref<63x128xf32, #tpu.memory_space<vmem>>, vector<1x128xf32>
    %264 = vector.broadcast %263 : vector<1x128xf32> to vector<16x128xf32>
    %265 = arith.mulf %264, %262 : vector<16x128xf32>
    %266 = arith.addf %261, %265 : vector<16x128xf32>
    %c2_152 = arith.constant 2 : index
    %c50_153 = arith.constant 50 : index
    %267 = vector.load %arg0[%c2_152, %c50_153] : memref<18x256xf32, #tpu.memory_space<vmem>>, vector<16x128xf32>
    %c53 = arith.constant 53 : index
    %c0_154 = arith.constant 0 : index
    %268 = vector.load %arg1[%c53, %c0_154] : memref<63x128xf32, #tpu.memory_space<vmem>>, vector<1x128xf32>
    %269 = vector.broadcast %268 : vector<1x128xf32> to vector<16x128xf32>
    %270 = arith.mulf %269, %267 : vector<16x128xf32>
    %271 = arith.addf %266, %270 : vector<16x128xf32>
    %c2_155 = arith.constant 2 : index
    %c64_156 = arith.constant 64 : index
    %272 = vector.load %arg0[%c2_155, %c64_156] : memref<18x256xf32, #tpu.memory_space<vmem>>, vector<16x128xf32>
    %c54 = arith.constant 54 : index
    %c0_157 = arith.constant 0 : index
    %273 = vector.load %arg1[%c54, %c0_157] : memref<63x128xf32, #tpu.memory_space<vmem>>, vector<1x128xf32>
    %274 = vector.broadcast %273 : vector<1x128xf32> to vector<16x128xf32>
    %275 = arith.mulf %274, %272 : vector<16x128xf32>
    %276 = arith.addf %271, %275 : vector<16x128xf32>
    %c2_158 = arith.constant 2 : index
    %c65_159 = arith.constant 65 : index
    %277 = vector.load %arg0[%c2_158, %c65_159] : memref<18x256xf32, #tpu.memory_space<vmem>>, vector<16x128xf32>
    %c55 = arith.constant 55 : index
    %c0_160 = arith.constant 0 : index
    %278 = vector.load %arg1[%c55, %c0_160] : memref<63x128xf32, #tpu.memory_space<vmem>>, vector<1x128xf32>
    %279 = vector.broadcast %278 : vector<1x128xf32> to vector<16x128xf32>
    %280 = arith.mulf %279, %277 : vector<16x128xf32>
    %281 = arith.addf %276, %280 : vector<16x128xf32>
    %c2_161 = arith.constant 2 : index
    %c66_162 = arith.constant 66 : index
    %282 = vector.load %arg0[%c2_161, %c66_162] : memref<18x256xf32, #tpu.memory_space<vmem>>, vector<16x128xf32>
    %c56 = arith.constant 56 : index
    %c0_163 = arith.constant 0 : index
    %283 = vector.load %arg1[%c56, %c0_163] : memref<63x128xf32, #tpu.memory_space<vmem>>, vector<1x128xf32>
    %284 = vector.broadcast %283 : vector<1x128xf32> to vector<16x128xf32>
    %285 = arith.mulf %284, %282 : vector<16x128xf32>
    %286 = arith.addf %281, %285 : vector<16x128xf32>
    %c2_164 = arith.constant 2 : index
    %c80_165 = arith.constant 80 : index
    %287 = vector.load %arg0[%c2_164, %c80_165] : memref<18x256xf32, #tpu.memory_space<vmem>>, vector<16x128xf32>
    %c57 = arith.constant 57 : index
    %c0_166 = arith.constant 0 : index
    %288 = vector.load %arg1[%c57, %c0_166] : memref<63x128xf32, #tpu.memory_space<vmem>>, vector<1x128xf32>
    %289 = vector.broadcast %288 : vector<1x128xf32> to vector<16x128xf32>
    %290 = arith.mulf %289, %287 : vector<16x128xf32>
    %291 = arith.addf %286, %290 : vector<16x128xf32>
    %c2_167 = arith.constant 2 : index
    %c81_168 = arith.constant 81 : index
    %292 = vector.load %arg0[%c2_167, %c81_168] : memref<18x256xf32, #tpu.memory_space<vmem>>, vector<16x128xf32>
    %c58 = arith.constant 58 : index
    %c0_169 = arith.constant 0 : index
    %293 = vector.load %arg1[%c58, %c0_169] : memref<63x128xf32, #tpu.memory_space<vmem>>, vector<1x128xf32>
    %294 = vector.broadcast %293 : vector<1x128xf32> to vector<16x128xf32>
    %295 = arith.mulf %294, %292 : vector<16x128xf32>
    %296 = arith.addf %291, %295 : vector<16x128xf32>
    %c2_170 = arith.constant 2 : index
    %c82_171 = arith.constant 82 : index
    %297 = vector.load %arg0[%c2_170, %c82_171] : memref<18x256xf32, #tpu.memory_space<vmem>>, vector<16x128xf32>
    %c59 = arith.constant 59 : index
    %c0_172 = arith.constant 0 : index
    %298 = vector.load %arg1[%c59, %c0_172] : memref<63x128xf32, #tpu.memory_space<vmem>>, vector<1x128xf32>
    %299 = vector.broadcast %298 : vector<1x128xf32> to vector<16x128xf32>
    %300 = arith.mulf %299, %297 : vector<16x128xf32>
    %301 = arith.addf %296, %300 : vector<16x128xf32>
    %c2_173 = arith.constant 2 : index
    %c96_174 = arith.constant 96 : index
    %302 = vector.load %arg0[%c2_173, %c96_174] : memref<18x256xf32, #tpu.memory_space<vmem>>, vector<16x128xf32>
    %c60 = arith.constant 60 : index
    %c0_175 = arith.constant 0 : index
    %303 = vector.load %arg1[%c60, %c0_175] : memref<63x128xf32, #tpu.memory_space<vmem>>, vector<1x128xf32>
    %304 = vector.broadcast %303 : vector<1x128xf32> to vector<16x128xf32>
    %305 = arith.mulf %304, %302 : vector<16x128xf32>
    %306 = arith.addf %301, %305 : vector<16x128xf32>
    %c2_176 = arith.constant 2 : index
    %c97_177 = arith.constant 97 : index
    %307 = vector.load %arg0[%c2_176, %c97_177] : memref<18x256xf32, #tpu.memory_space<vmem>>, vector<16x128xf32>
    %c61 = arith.constant 61 : index
    %c0_178 = arith.constant 0 : index
    %308 = vector.load %arg1[%c61, %c0_178] : memref<63x128xf32, #tpu.memory_space<vmem>>, vector<1x128xf32>
    %309 = vector.broadcast %308 : vector<1x128xf32> to vector<16x128xf32>
    %310 = arith.mulf %309, %307 : vector<16x128xf32>
    %311 = arith.addf %306, %310 : vector<16x128xf32>
    %c2_179 = arith.constant 2 : index
    %c98_180 = arith.constant 98 : index
    %312 = vector.load %arg0[%c2_179, %c98_180] : memref<18x256xf32, #tpu.memory_space<vmem>>, vector<16x128xf32>
    %c62 = arith.constant 62 : index
    %c0_181 = arith.constant 0 : index
    %313 = vector.load %arg1[%c62, %c0_181] : memref<63x128xf32, #tpu.memory_space<vmem>>, vector<1x128xf32>
    %314 = vector.broadcast %313 : vector<1x128xf32> to vector<16x128xf32>
    %315 = arith.mulf %314, %312 : vector<16x128xf32>
    %316 = arith.addf %311, %315 : vector<16x128xf32>
    %cst = arith.constant dense<0xFF800000> : vector<128xf32>
    %317 = vector.multi_reduction <maximumf>, %316, %cst [0] : vector<16x128xf32> to vector<128xf32>
    %318 = vector.shape_cast %317 : vector<128xf32> to vector<1x128xf32>
    %319 = vector.broadcast %318 : vector<1x128xf32> to vector<16x128xf32>
    %320 = arith.subf %316, %319 : vector<16x128xf32>
    %321 = math.exp %320 : vector<16x128xf32>
    %cst_182 = arith.constant dense<0.000000e+00> : vector<128xf32>
    %322 = vector.multi_reduction <add>, %321, %cst_182 [0] : vector<16x128xf32> to vector<128xf32>
    %323 = vector.shape_cast %322 : vector<128xf32> to vector<1x128xf32>
    %324 = tpu.reciprocal %323 {approx = true} : vector<1x128xf32> -> vector<1x128xf32>
    %325 = arith.mulf %323, %324 : vector<1x128xf32>
    %cst_183 = arith.constant 2.000000e+00 : f32
    %326 = vector.broadcast %cst_183 : f32 to vector<1x128xf32>
    %327 = arith.subf %326, %325 : vector<1x128xf32>
    %328 = arith.mulf %324, %327 : vector<1x128xf32>
    %c1_184 = arith.constant 1 : index
    %c49_185 = arith.constant 49 : index
    %329 = vector.load %arg0[%c1_184, %c49_185] : memref<18x256xf32, #tpu.memory_space<vmem>>, vector<16x128xf32>
    %330 = vector.broadcast %328 : vector<1x128xf32> to vector<16x128xf32>
    %331 = arith.mulf %321, %330 : vector<16x128xf32>
    %332 = arith.mulf %331, %329 : vector<16x128xf32>
    %c0_186 = arith.constant 0 : index
    %c0_187 = arith.constant 0 : index
    %333 = vector.load %arg3[%c0_186, %c0_187] : memref<16x128xf32, #tpu.memory_space<vmem>>, vector<16x128xf32>
    tpu.vector_store %arg3[%c0_186, %c0_187], %332 {strides = array<i32>} : memref<16x128xf32, #tpu.memory_space<vmem>>, vector<16x128xf32>,
    return
  }
}

</mosaic_0001>

<llo_original>
// kernel: attention1_forward.1
$region0: #{attention1_forward.1}
  #allocation0 [shape = 'u32[]', space=smem, size = 0x4, offset = 0x4, fixed_abs, tag = 'smem constant byte address 0x4 - core index']
  #allocation1 [shape = 'u32[72,128]{1,0:T(1,128)}', space=vmem, size = 0x9000, scoped, tag = 'internal scratch']
  %s0 = inlined_call_operand.vmem [shape: f32[18,256], index: 0, kind: input, shape index: {}]
  %s1 = inlined_call_operand.vmem [shape: f32[63,128], index: 1, kind: input, shape index: {}]
  %s2 = inlined_call_operand.vmem [shape: f32[1,128], index: 2, kind: input, shape index: {}]
  %s3 = inlined_call_operand.vmem [shape: f32[16,128], index: 3, kind: output, shape index: {}]
  %s4 = sld [smem:[#allocation0]]
  $region22: #{attention1_forward.1} parent=0
    _
  %s6 = ssub.s32 1, %s4
  %s7 = scalar_select 0, %s6, %s4
  // Predicated region
  $region2: #{attention1_forward.1} parent=0 // pred_check
    _
  $region3: #{attention1_forward.1} parent=0 // pred_check_branch
    %9 = sbr.rel (0) target = $region5
  $region4: #{attention1_forward.1} parent=0 // pred_region
    _
  $region5: #{attention1_forward.1} parent=0 // pred_fallthru
    _
  // Predicated region
  $region6: #{attention1_forward.1} parent=0 // pred_check
    _
  $region7: #{attention1_forward.1} parent=0 // pred_check_branch
    %11 = sbr.rel (0) target = $region9
  $region8: #{attention1_forward.1} parent=0 // pred_region
    _
  $region9: #{attention1_forward.1} parent=0 // pred_fallthru
    _
  // Predicated region
  $region10: #{attention1_forward.1} parent=0 // pred_check
    _
  $region11: #{attention1_forward.1} parent=0 // pred_check_branch
    %13 = sbr.rel (0) target = $region13
  $region12: #{attention1_forward.1} parent=0 // pred_region
    _
  $region13: #{attention1_forward.1} parent=0 // pred_fallthru
    _
  %v14 = vld [vmem:[%s2] sm:$0x1]
  %v15 = vld [vmem:[%s0] sm:$0xff]
  %v16 = vld [vmem:[%s0 + $0x10] sm:$0xff]
  %v17 = vld [vmem:[%s1] sm:$0x1]
  %v18 = vperm.slane %v17, 0
  %v19 = vmul.f32 %v18, %v15
  %v20 = vmul.f32 %v18, %v16
  %v22 = vperm.slane %v14, 0
  %v24 = vadd.f32 %v22, %v19
  %v25 = vadd.f32 %v22, %v20
  %v26 = vld [vmem:[%s0 + $0x8] sm:$0xff]
  %v27 = vld [vmem:[%s0 + $0x18] sm:$0xff]
  %v28 = vld [vmem:[%s1 + $0x1] sm:$0x1]
  %v29 = vperm.slane %v28, 0
  %34 = vrot.lane.b32.xlu0 %v15, 127
  %v35 = vpop.permute.xlu0 %34
  %36 = vrot.lane.b32.xlu0 %v26, 127
  %v37 = vpop.permute.xlu0 %36
  %38 = vrot.lane.b32.xlu0 %v16, 127
  %v39 = vpop.permute.xlu0 %38
  %40 = vrot.lane.b32.xlu0 %v27, 127
  %v41 = vpop.permute.xlu0 %40
  %vm42 = vcmask 1039360
  %v43 = vsel %vm42, %v35, %v37
  %v44 = vsel %vm42, %v39, %v41
  %v47 = vmul.f32 %v29, %v43
  %v48 = vmul.f32 %v29, %v44
  %v49 = vadd.f32 %v24, %v47
  %v50 = vadd.f32 %v25, %v48
  %v51 = vld [vmem:[%s1 + $0x2] sm:$0x1]
  %v52 = vperm.slane %v51, 0
  %53 = vrot.lane.b32.xlu0 %v15, 126
  %v54 = vpop.permute.xlu0 %53
  %55 = vrot.lane.b32.xlu0 %v26, 126
  %v56 = vpop.permute.xlu0 %55
  %57 = vrot.lane.b32.xlu0 %v16, 126
  %v58 = vpop.permute.xlu0 %57
  %59 = vrot.lane.b32.xlu0 %v27, 126
  %v60 = vpop.permute.xlu0 %59
  %vm61 = vcmask 1031168
  %v62 = vsel %vm61, %v54, %v56
  %v63 = vsel %vm61, %v58, %v60
  %v66 = vmul.f32 %v52, %v62
  %v67 = vmul.f32 %v52, %v63
  %v68 = vadd.f32 %v49, %v66
  %v69 = vadd.f32 %v50, %v67
  %v70 = vld [vmem:[%s1 + $0x3] sm:$0x1]
  %v71 = vperm.slane %v70, 0
  %72 = vrot.lane.b32.xlu0 %v15, 112
  %v73 = vpop.permute.xlu0 %72
  %74 = vrot.lane.b32.xlu0 %v26, 112
  %v75 = vpop.permute.xlu0 %74
  %76 = vrot.lane.b32.xlu0 %v16, 112
  %v77 = vpop.permute.xlu0 %76
  %78 = vrot.lane.b32.xlu0 %v27, 112
  %v79 = vpop.permute.xlu0 %78
  %vm80 = vcmask 916480
  %v81 = vsel %vm80, %v73, %v75
  %v82 = vsel %vm80, %v77, %v79
  %v85 = vmul.f32 %v71, %v81
  %v86 = vmul.f32 %v71, %v82
  %v87 = vadd.f32 %v68, %v85
  %v88 = vadd.f32 %v69, %v86
  %v89 = vld [vmem:[%s1 + $0x4] sm:$0x1]
  %v90 = vperm.slane %v89, 0
  %91 = vrot.lane.b32.xlu0 %v15, 111
  %v92 = vpop.permute.xlu0 %91
  %93 = vrot.lane.b32.xlu0 %v26, 111
  %v94 = vpop.permute.xlu0 %93
  %95 = vrot.lane.b32.xlu0 %v16, 111
  %v96 = vpop.permute.xlu0 %95
  %97 = vrot.lane.b32.xlu0 %v27, 111
  %v98 = vpop.permute.xlu0 %97
  %vm99 = vcmask 908288
  %v100 = vsel %vm99, %v92, %v94
  %v101 = vsel %vm99, %v96, %v98
  %v104 = vmul.f32 %v90, %v100
  %v105 = vmul.f32 %v90, %v101
  %v106 = vadd.f32 %v87, %v104
  %v107 = vadd.f32 %v88, %v105
  %v108 = vld [vmem:[%s1 + $0x5] sm:$0x1]
  %v109 = vperm.slane %v108, 0
  %110 = vrot.lane.b32.xlu0 %v15, 110
  %v111 = vpop.permute.xlu0 %110
  %112 = vrot.lane.b32.xlu0 %v26, 110
  %v113 = vpop.permute.xlu0 %112
  %114 = vrot.lane.b32.xlu0 %v16, 110
  %v115 = vpop.permute.xlu0 %114
  %116 = vrot.lane.b32.xlu0 %v27, 110
  %v117 = vpop.permute.xlu0 %116
  %vm118 = vcmask 900096
  %v119 = vsel %vm118, %v111, %v113
  %v120 = vsel %vm118, %v115, %v117
  %v123 = vmul.f32 %v109, %v119
  %v124 = vmul.f32 %v109, %v120
  %v125 = vadd.f32 %v106, %v123
  %v126 = vadd.f32 %v107, %v124
  %v127 = vld [vmem:[%s1 + $0x6] sm:$0x1]
  %v128 = vperm.slane %v127, 0
  %129 = vrot.lane.b32.xlu0 %v15, 96
  %v130 = vpop.permute.xlu0 %129
  %131 = vrot.lane.b32.xlu0 %v26, 96
  %v132 = vpop.permute.xlu0 %131
  %133 = vrot.lane.b32.xlu0 %v16, 96
  %v134 = vpop.permute.xlu0 %133
  %135 = vrot.lane.b32.xlu0 %v27, 96
  %v136 = vpop.permute.xlu0 %135
  %vm137 = vcmask 785408
  %v138 = vsel %vm137, %v130, %v132
  %v139 = vsel %vm137, %v134, %v136
  %v142 = vmul.f32 %v128, %v138
  %v143 = vmul.f32 %v128, %v139
  %v144 = vadd.f32 %v125, %v142
  %v145 = vadd.f32 %v126, %v143
  %v146 = vld [vmem:[%s1 + $0x7] sm:$0x1]
  %v147 = vperm.slane %v146, 0
  %148 = vrot.lane.b32.xlu0 %v15, 95
  %v149 = vpop.permute.xlu0 %148
  %150 = vrot.lane.b32.xlu0 %v26, 95
  %v151 = vpop.permute.xlu0 %150
  %152 = vrot.lane.b32.xlu0 %v16, 95
  %v153 = vpop.permute.xlu0 %152
  %154 = vrot.lane.b32.xlu0 %v27, 95
  %v155 = vpop.permute.xlu0 %154
  %vm156 = vcmask 777216
  %v157 = vsel %vm156, %v149, %v151
  %v158 = vsel %vm156, %v153, %v155
  %v161 = vmul.f32 %v147, %v157
  %v162 = vmul.f32 %v147, %v158
  %v163 = vadd.f32 %v144, %v161
  %v164 = vadd.f32 %v145, %v162
  %v165 = vld [vmem:[%s1 + $0x8] sm:$0x1]
  %v166 = vperm.slane %v165, 0
  %167 = vrot.lane.b32.xlu0 %v15, 94
  %v168 = vpop.permute.xlu0 %167
  %169 = vrot.lane.b32.xlu0 %v26, 94
  %v170 = vpop.permute.xlu0 %169
  %171 = vrot.lane.b32.xlu0 %v16, 94
  %v172 = vpop.permute.xlu0 %171
  %173 = vrot.lane.b32.xlu0 %v27, 94
  %v174 = vpop.permute.xlu0 %173
  %vm175 = vcmask 769024
  %v176 = vsel %vm175, %v168, %v170
  %v177 = vsel %vm175, %v172, %v174
  %v180 = vmul.f32 %v166, %v176
  %v181 = vmul.f32 %v166, %v177
  %v182 = vadd.f32 %v163, %v180
  %v183 = vadd.f32 %v164, %v181
  %v184 = vld [vmem:[%s1 + $0x9] sm:$0x1]
  %v185 = vperm.slane %v184, 0
  %186 = vrot.lane.b32.xlu0 %v15, 80
  %v187 = vpop.permute.xlu0 %186
  %188 = vrot.lane.b32.xlu0 %v26, 80
  %v189 = vpop.permute.xlu0 %188
  %190 = vrot.lane.b32.xlu0 %v16, 80
  %v191 = vpop.permute.xlu0 %190
  %192 = vrot.lane.b32.xlu0 %v27, 80
  %v193 = vpop.permute.xlu0 %192
  %vm194 = vcmask 654336
  %v195 = vsel %vm194, %v187, %v189
  %v196 = vsel %vm194, %v191, %v193
  %v199 = vmul.f32 %v185, %v195
  %v200 = vmul.f32 %v185, %v196
  %v201 = vadd.f32 %v182, %v199
  %v202 = vadd.f32 %v183, %v200
  %v203 = vld [vmem:[%s1 + $0xa] sm:$0x1]
  %v204 = vperm.slane %v203, 0
  %205 = vrot.lane.b32.xlu0 %v15, 79
  %v206 = vpop.permute.xlu0 %205
  %207 = vrot.lane.b32.xlu0 %v26, 79
  %v208 = vpop.permute.xlu0 %207
  %209 = vrot.lane.b32.xlu0 %v16, 79
  %v210 = vpop.permute.xlu0 %209
  %211 = vrot.lane.b32.xlu0 %v27, 79
  %v212 = vpop.permute.xlu0 %211
  %vm213 = vcmask 646144
  %v214 = vsel %vm213, %v206, %v208
  %v215 = vsel %vm213, %v210, %v212
  %v218 = vmul.f32 %v204, %v214
  %v219 = vmul.f32 %v204, %v215
  %v220 = vadd.f32 %v201, %v218
  %v221 = vadd.f32 %v202, %v219
  %v222 = vld [vmem:[%s1 + $0xb] sm:$0x1]
  %v223 = vperm.slane %v222, 0
  %224 = vrot.lane.b32.xlu0 %v15, 78
  %v225 = vpop.permute.xlu0 %224
  %226 = vrot.lane.b32.xlu0 %v26, 78
  %v227 = vpop.permute.xlu0 %226
  %228 = vrot.lane.b32.xlu0 %v16, 78
  %v229 = vpop.permute.xlu0 %228
  %230 = vrot.lane.b32.xlu0 %v27, 78
  %v231 = vpop.permute.xlu0 %230
  %vm232 = vcmask 637952
  %v233 = vsel %vm232, %v225, %v227
  %v234 = vsel %vm232, %v229, %v231
  %v237 = vmul.f32 %v223, %v233
  %v238 = vmul.f32 %v223, %v234
  %v239 = vadd.f32 %v220, %v237
  %v240 = vadd.f32 %v221, %v238
  %v241 = vld [vmem:[%s1 + $0xc] sm:$0x1]
  %v242 = vperm.slane %v241, 0
  %243 = vrot.lane.b32.xlu0 %v15, 64
  %v244 = vpop.permute.xlu0 %243
  %245 = vrot.lane.b32.xlu0 %v26, 64
  %v246 = vpop.permute.xlu0 %245
  %247 = vrot.lane.b32.xlu0 %v16, 64
  %v248 = vpop.permute.xlu0 %247
  %249 = vrot.lane.b32.xlu0 %v27, 64
  %v250 = vpop.permute.xlu0 %249
  %vm251 = vcmask 523264
  %v252 = vsel %vm251, %v244, %v246
  %v253 = vsel %vm251, %v248, %v250
  %v256 = vmul.f32 %v242, %v252
  %v257 = vmul.f32 %v242, %v253
  %v258 = vadd.f32 %v239, %v256
  %v259 = vadd.f32 %v240, %v257
  %v260 = vld [vmem:[%s1 + $0xd] sm:$0x1]
  %v261 = vperm.slane %v260, 0
  %262 = vrot.lane.b32.xlu0 %v15, 63
  %v263 = vpop.permute.xlu0 %262
  %264 = vrot.lane.b32.xlu0 %v26, 63
  %v265 = vpop.permute.xlu0 %264
  %266 = vrot.lane.b32.xlu0 %v16, 63
  %v267 = vpop.permute.xlu0 %266
  %268 = vrot.lane.b32.xlu0 %v27, 63
  %v269 = vpop.permute.xlu0 %268
  %vm270 = vcmask 515072
  %v271 = vsel %vm270, %v263, %v265
  %v272 = vsel %vm270, %v267, %v269
  %v275 = vmul.f32 %v261, %v271
  %v276 = vmul.f32 %v261, %v272
  %v277 = vadd.f32 %v258, %v275
  %v278 = vadd.f32 %v259, %v276
  %v279 = vld [vmem:[%s1 + $0xe] sm:$0x1]
  %v280 = vperm.slane %v279, 0
  %281 = vrot.lane.b32.xlu0 %v15, 62
  %v282 = vpop.permute.xlu0 %281
  %283 = vrot.lane.b32.xlu0 %v26, 62
  %v284 = vpop.permute.xlu0 %283
  %285 = vrot.lane.b32.xlu0 %v16, 62
  %v286 = vpop.permute.xlu0 %285
  %287 = vrot.lane.b32.xlu0 %v27, 62
  %v288 = vpop.permute.xlu0 %287
  %vm289 = vcmask 506880
  %v290 = vsel %vm289, %v282, %v284
  %v291 = vsel %vm289, %v286, %v288
  %v294 = vmul.f32 %v280, %v290
  %v295 = vmul.f32 %v280, %v291
  %v296 = vadd.f32 %v277, %v294
  %v297 = vadd.f32 %v278, %v295
  %v298 = vld [vmem:[%s1 + $0xf] sm:$0x1]
  %v299 = vperm.slane %v298, 0
  %300 = vrot.lane.b32.xlu0 %v15, 48
  %v301 = vpop.permute.xlu0 %300
  %302 = vrot.lane.b32.xlu0 %v26, 48
  %v303 = vpop.permute.xlu0 %302
  %304 = vrot.lane.b32.xlu0 %v16, 48
  %v305 = vpop.permute.xlu0 %304
  %306 = vrot.lane.b32.xlu0 %v27, 48
  %v307 = vpop.permute.xlu0 %306
  %vm308 = vcmask 392192
  %v309 = vsel %vm308, %v301, %v303
  %v310 = vsel %vm308, %v305, %v307
  %v313 = vmul.f32 %v299, %v309
  %v314 = vmul.f32 %v299, %v310
  %v315 = vadd.f32 %v296, %v313
  %v316 = vadd.f32 %v297, %v314
  %v317 = vld [vmem:[%s1 + $0x10] sm:$0x1]
  %v318 = vperm.slane %v317, 0
  %319 = vrot.lane.b32.xlu0 %v15, 47
  %v320 = vpop.permute.xlu0 %319
  %321 = vrot.lane.b32.xlu0 %v26, 47
  %v322 = vpop.permute.xlu0 %321
  %323 = vrot.lane.b32.xlu0 %v16, 47
  %v324 = vpop.permute.xlu0 %323
  %325 = vrot.lane.b32.xlu0 %v27, 47
  %v326 = vpop.permute.xlu0 %325
  %vm327 = vcmask 384000
  %v328 = vsel %vm327, %v320, %v322
  %v329 = vsel %vm327, %v324, %v326
  %v332 = vmul.f32 %v318, %v328
  %v333 = vmul.f32 %v318, %v329
  %v334 = vadd.f32 %v315, %v332
  %v335 = vadd.f32 %v316, %v333
  %v336 = vld [vmem:[%s1 + $0x11] sm:$0x1]
  %v337 = vperm.slane %v336, 0
  %338 = vrot.lane.b32.xlu0 %v15, 46
  %v339 = vpop.permute.xlu0 %338
  %340 = vrot.lane.b32.xlu0 %v26, 46
  %v341 = vpop.permute.xlu0 %340
  %342 = vrot.lane.b32.xlu0 %v16, 46
  %v343 = vpop.permute.xlu0 %342
  %344 = vrot.lane.b32.xlu0 %v27, 46
  %v345 = vpop.permute.xlu0 %344
  %vm346 = vcmask 375808
  %v347 = vsel %vm346, %v339, %v341
  %v348 = vsel %vm346, %v343, %v345
  %v351 = vmul.f32 %v337, %v347
  %v352 = vmul.f32 %v337, %v348
  %v353 = vadd.f32 %v334, %v351
  %v354 = vadd.f32 %v335, %v352
  %v355 = vld [vmem:[%s1 + $0x12] sm:$0x1]
  %v356 = vperm.slane %v355, 0
  %357 = vrot.lane.b32.xlu0 %v15, 32
  %v358 = vpop.permute.xlu0 %357
  %359 = vrot.lane.b32.xlu0 %v26, 32
  %v360 = vpop.permute.xlu0 %359
  %361 = vrot.lane.b32.xlu0 %v16, 32
  %v362 = vpop.permute.xlu0 %361
  %363 = vrot.lane.b32.xlu0 %v27, 32
  %v364 = vpop.permute.xlu0 %363
  %vm365 = vcmask 261120
  %v366 = vsel %vm365, %v358, %v360
  %v367 = vsel %vm365, %v362, %v364
  %v370 = vmul.f32 %v356, %v366
  %v371 = vmul.f32 %v356, %v367
  %v372 = vadd.f32 %v353, %v370
  %v373 = vadd.f32 %v354, %v371
  %v374 = vld [vmem:[%s1 + $0x13] sm:$0x1]
  %v375 = vperm.slane %v374, 0
  %376 = vrot.lane.b32.xlu0 %v15, 31
  %v377 = vpop.permute.xlu0 %376
  %378 = vrot.lane.b32.xlu0 %v26, 31
  %v379 = vpop.permute.xlu0 %378
  %380 = vrot.lane.b32.xlu0 %v16, 31
  %v381 = vpop.permute.xlu0 %380
  %382 = vrot.lane.b32.xlu0 %v27, 31
  %v383 = vpop.permute.xlu0 %382
  %vm384 = vcmask 252928
  %v385 = vsel %vm384, %v377, %v379
  %v386 = vsel %vm384, %v381, %v383
  %v389 = vmul.f32 %v375, %v385
  %v390 = vmul.f32 %v375, %v386
  %v391 = vadd.f32 %v372, %v389
  %v392 = vadd.f32 %v373, %v390
  %v393 = vld [vmem:[%s1 + $0x14] sm:$0x1]
  %v394 = vperm.slane %v393, 0
  %395 = vrot.lane.b32.xlu0 %v15, 30
  %v396 = vpop.permute.xlu0 %395
  %397 = vrot.lane.b32.xlu0 %v26, 30
  %v398 = vpop.permute.xlu0 %397
  %399 = vrot.lane.b32.xlu0 %v16, 30
  %v400 = vpop.permute.xlu0 %399
  %401 = vrot.lane.b32.xlu0 %v27, 30
  %v402 = vpop.permute.xlu0 %401
  %vm403 = vcmask 244736
  %v404 = vsel %vm403, %v396, %v398
  %v405 = vsel %vm403, %v400, %v402
  %v408 = vmul.f32 %v394, %v404
  %v409 = vmul.f32 %v394, %v405
  %v410 = vadd.f32 %v391, %v408
  %v411 = vadd.f32 %v392, %v409
  %v412 = vld [vmem:[%s0] sm:$0xfe]
  %v413 = vld [vmem:[%s0 + $0x20] sm:$0x1]
  %v414 = vld [vmem:[%s1 + $0x15] sm:$0x1]
  %v415 = vperm.slane %v414, 0
  %v416 = vmul.f32 %v415, %v412
  %v417 = vmul.f32 %v415, %v16
  %v418 = vmul.f32 %v415, %v413
  %vm422 = vcmask 1046528
  %v423 = vrot.slane %v416, 1
  %v424 = vrot.slane %v417, 1
  %v425 = vsel %vm422, %v423, %v424
  %v426 = vrot.slane %v418, 1
  %v427 = vsel %vm422, %v424, %v426
  %v430 = vadd.f32 %v410, %v425
  %v431 = vadd.f32 %v411, %v427
  %v432 = vld [vmem:[%s0 + $0x8] sm:$0xfe]
  %v433 = vld [vmem:[%s0 + $0x28] sm:$0x1]
  %v434 = vld [vmem:[%s1 + $0x16] sm:$0x1]
  %v435 = vperm.slane %v434, 0
  %v440 = vrot.slane %v412, 1
  %v441 = vrot.slane %v16, 1
  %v442 = vsel %vm422, %v440, %v441
  %v443 = vrot.slane %v432, 1
  %v444 = vrot.slane %v27, 1
  %v445 = vsel %vm422, %v443, %v444
  %v446 = vrot.slane %v413, 1
  %v447 = vsel %vm422, %v441, %v446
  %v448 = vrot.slane %v433, 1
  %v449 = vsel %vm422, %v444, %v448
  %450 = vrot.lane.b32.xlu0 %v442, 127
  %v451 = vpop.permute.xlu0 %450
  %452 = vrot.lane.b32.xlu0 %v445, 127
  %v453 = vpop.permute.xlu0 %452
  %454 = vrot.lane.b32.xlu0 %v447, 127
  %v455 = vpop.permute.xlu0 %454
  %456 = vrot.lane.b32.xlu0 %v449, 127
  %v457 = vpop.permute.xlu0 %456
  %v458 = vsel %vm42, %v451, %v453
  %v459 = vsel %vm42, %v455, %v457
  %v462 = vmul.f32 %v435, %v458
  %v463 = vmul.f32 %v435, %v459
  %v464 = vadd.f32 %v430, %v462
  %v465 = vadd.f32 %v431, %v463
  %v466 = vld [vmem:[%s1 + $0x17] sm:$0x1]
  %v467 = vperm.slane %v466, 0
  %468 = vrot.lane.b32.xlu0 %v442, 126
  %v469 = vpop.permute.xlu0 %468
  %470 = vrot.lane.b32.xlu0 %v445, 126
  %v471 = vpop.permute.xlu0 %470
  %472 = vrot.lane.b32.xlu0 %v447, 126
  %v473 = vpop.permute.xlu0 %472
  %474 = vrot.lane.b32.xlu0 %v449, 126
  %v475 = vpop.permute.xlu0 %474
  %v476 = vsel %vm61, %v469, %v471
  %v477 = vsel %vm61, %v473, %v475
  %v480 = vmul.f32 %v467, %v476
  %v481 = vmul.f32 %v467, %v477
  %v482 = vadd.f32 %v464, %v480
  %v483 = vadd.f32 %v465, %v481
  %v484 = vld [vmem:[%s1 + $0x18] sm:$0x1]
  %v485 = vperm.slane %v484, 0
  %486 = vrot.lane.b32.xlu0 %v442, 112
  %v487 = vpop.permute.xlu0 %486
  %488 = vrot.lane.b32.xlu0 %v445, 112
  %v489 = vpop.permute.xlu0 %488
  %490 = vrot.lane.b32.xlu0 %v447, 112
  %v491 = vpop.permute.xlu0 %490
  %492 = vrot.lane.b32.xlu0 %v449, 112
  %v493 = vpop.permute.xlu0 %492
  %v494 = vsel %vm80, %v487, %v489
  %v495 = vsel %vm80, %v491, %v493
  %v498 = vmul.f32 %v485, %v494
  %v499 = vmul.f32 %v485, %v495
  %v500 = vadd.f32 %v482, %v498
  %v501 = vadd.f32 %v483, %v499
  %v502 = vld [vmem:[%s1 + $0x19] sm:$0x1]
  %v503 = vperm.slane %v502, 0
  %504 = vrot.lane.b32.xlu0 %v442, 111
  %v505 = vpop.permute.xlu0 %504
  %506 = vrot.lane.b32.xlu0 %v445, 111
  %v507 = vpop.permute.xlu0 %506
  %508 = vrot.lane.b32.xlu0 %v447, 111
  %v509 = vpop.permute.xlu0 %508
  %510 = vrot.lane.b32.xlu0 %v449, 111
  %v511 = vpop.permute.xlu0 %510
  %v512 = vsel %vm99, %v505, %v507
  %v513 = vsel %vm99, %v509, %v511
  %v516 = vmul.f32 %v503, %v512
  %v517 = vmul.f32 %v503, %v513
  %v518 = vadd.f32 %v500, %v516
  %v519 = vadd.f32 %v501, %v517
  %v520 = vld [vmem:[%s1 + $0x1a] sm:$0x1]
  %v521 = vperm.slane %v520, 0
  %522 = vrot.lane.b32.xlu0 %v442, 110
  %v523 = vpop.permute.xlu0 %522
  %524 = vrot.lane.b32.xlu0 %v445, 110
  %v525 = vpop.permute.xlu0 %524
  %526 = vrot.lane.b32.xlu0 %v447, 110
  %v527 = vpop.permute.xlu0 %526
  %528 = vrot.lane.b32.xlu0 %v449, 110
  %v529 = vpop.permute.xlu0 %528
  %v530 = vsel %vm118, %v523, %v525
  %v531 = vsel %vm118, %v527, %v529
  %v534 = vmul.f32 %v521, %v530
  %v535 = vmul.f32 %v521, %v531
  %v536 = vadd.f32 %v518, %v534
  %v537 = vadd.f32 %v519, %v535
  %v538 = vld [vmem:[%s1 + $0x1b] sm:$0x1]
  %v539 = vperm.slane %v538, 0
  %540 = vrot.lane.b32.xlu0 %v442, 96
  %v541 = vpop.permute.xlu0 %540
  %542 = vrot.lane.b32.xlu0 %v445, 96
  %v543 = vpop.permute.xlu0 %542
  %544 = vrot.lane.b32.xlu0 %v447, 96
  %v545 = vpop.permute.xlu0 %544
  %546 = vrot.lane.b32.xlu0 %v449, 96
  %v547 = vpop.permute.xlu0 %546
  %v548 = vsel %vm137, %v541, %v543
  %v549 = vsel %vm137, %v545, %v547
  %v552 = vmul.f32 %v539, %v548
  %v553 = vmul.f32 %v539, %v549
  %v554 = vadd.f32 %v536, %v552
  %v555 = vadd.f32 %v537, %v553
  %v556 = vld [vmem:[%s1 + $0x1c] sm:$0x1]
  %v557 = vperm.slane %v556, 0
  %558 = vrot.lane.b32.xlu0 %v442, 95
  %v559 = vpop.permute.xlu0 %558
  %560 = vrot.lane.b32.xlu0 %v445, 95
  %v561 = vpop.permute.xlu0 %560
  %562 = vrot.lane.b32.xlu0 %v447, 95
  %v563 = vpop.permute.xlu0 %562
  %564 = vrot.lane.b32.xlu0 %v449, 95
  %v565 = vpop.permute.xlu0 %564
  %v566 = vsel %vm156, %v559, %v561
  %v567 = vsel %vm156, %v563, %v565
  %v570 = vmul.f32 %v557, %v566
  %v571 = vmul.f32 %v557, %v567
  %v572 = vadd.f32 %v554, %v570
  %v573 = vadd.f32 %v555, %v571
  %v574 = vld [vmem:[%s1 + $0x1d] sm:$0x1]
  %v575 = vperm.slane %v574, 0
  %576 = vrot.lane.b32.xlu0 %v442, 94
  %v577 = vpop.permute.xlu0 %576
  %578 = vrot.lane.b32.xlu0 %v445, 94
  %v579 = vpop.permute.xlu0 %578
  %580 = vrot.lane.b32.xlu0 %v447, 94
  %v581 = vpop.permute.xlu0 %580
  %582 = vrot.lane.b32.xlu0 %v449, 94
  %v583 = vpop.permute.xlu0 %582
  %v584 = vsel %vm175, %v577, %v579
  %v585 = vsel %vm175, %v581, %v583
  %v588 = vmul.f32 %v575, %v584
  %v589 = vmul.f32 %v575, %v585
  %v590 = vadd.f32 %v572, %v588
  %v591 = vadd.f32 %v573, %v589
  %v592 = vld [vmem:[%s1 + $0x1e] sm:$0x1]
  %v593 = vperm.slane %v592, 0
  %594 = vrot.lane.b32.xlu0 %v442, 80
  %v595 = vpop.permute.xlu0 %594
  %596 = vrot.lane.b32.xlu0 %v445, 80
  %v597 = vpop.permute.xlu0 %596
  %598 = vrot.lane.b32.xlu0 %v447, 80
  %v599 = vpop.permute.xlu0 %598
  %600 = vrot.lane.b32.xlu0 %v449, 80
  %v601 = vpop.permute.xlu0 %600
  %v602 = vsel %vm194, %v595, %v597
  %v603 = vsel %vm194, %v599, %v601
  %v606 = vmul.f32 %v593, %v602
  %v607 = vmul.f32 %v593, %v603
  %v608 = vadd.f32 %v590, %v606
  %v609 = vadd.f32 %v591, %v607
  %v610 = vld [vmem:[%s1 + $0x1f] sm:$0x1]
  %v611 = vperm.slane %v610, 0
  %612 = vrot.lane.b32.xlu0 %v442, 79
  %v613 = vpop.permute.xlu0 %612
  %614 = vrot.lane.b32.xlu0 %v445, 79
  %v615 = vpop.permute.xlu0 %614
  %616 = vrot.lane.b32.xlu0 %v447, 79
  %v617 = vpop.permute.xlu0 %616
  %618 = vrot.lane.b32.xlu0 %v449, 79
  %v619 = vpop.permute.xlu0 %618
  %v620 = vsel %vm213, %v613, %v615
  %v621 = vsel %vm213, %v617, %v619
  %v624 = vmul.f32 %v611, %v620
  %v625 = vmul.f32 %v611, %v621
  %v626 = vadd.f32 %v608, %v624
  %v627 = vadd.f32 %v609, %v625
  %v628 = vld [vmem:[%s1 + $0x20] sm:$0x1]
  %v629 = vperm.slane %v628, 0
  %630 = vrot.lane.b32.xlu0 %v442, 78
  %v631 = vpop.permute.xlu0 %630
  %632 = vrot.lane.b32.xlu0 %v445, 78
  %v633 = vpop.permute.xlu0 %632
  %634 = vrot.lane.b32.xlu0 %v447, 78
  %v635 = vpop.permute.xlu0 %634
  %636 = vrot.lane.b32.xlu0 %v449, 78
  %v637 = vpop.permute.xlu0 %636
  %v638 = vsel %vm232, %v631, %v633
  %v639 = vsel %vm232, %v635, %v637
  %v642 = vmul.f32 %v629, %v638
  %v643 = vmul.f32 %v629, %v639
  %v644 = vadd.f32 %v626, %v642
  %v645 = vadd.f32 %v627, %v643
  %v646 = vld [vmem:[%s1 + $0x21] sm:$0x1]
  %v647 = vperm.slane %v646, 0
  %648 = vrot.lane.b32.xlu0 %v442, 64
  %v649 = vpop.permute.xlu0 %648
  %650 = vrot.lane.b32.xlu0 %v445, 64
  %v651 = vpop.permute.xlu0 %650
  %652 = vrot.lane.b32.xlu0 %v447, 64
  %v653 = vpop.permute.xlu0 %652
  %654 = vrot.lane.b32.xlu0 %v449, 64
  %v655 = vpop.permute.xlu0 %654
  %v656 = vsel %vm251, %v649, %v651
  %v657 = vsel %vm251, %v653, %v655
  %v660 = vmul.f32 %v647, %v656
  %v661 = vmul.f32 %v647, %v657
  %v662 = vadd.f32 %v644, %v660
  %v663 = vadd.f32 %v645, %v661
  %v664 = vld [vmem:[%s1 + $0x22] sm:$0x1]
  %v665 = vperm.slane %v664, 0
  %666 = vrot.lane.b32.xlu0 %v442, 63
  %v667 = vpop.permute.xlu0 %666
  %668 = vrot.lane.b32.xlu0 %v445, 63
  %v669 = vpop.permute.xlu0 %668
  %670 = vrot.lane.b32.xlu0 %v447, 63
  %v671 = vpop.permute.xlu0 %670
  %672 = vrot.lane.b32.xlu0 %v449, 63
  %v673 = vpop.permute.xlu0 %672
  %v674 = vsel %vm270, %v667, %v669
  %v675 = vsel %vm270, %v671, %v673
  %v678 = vmul.f32 %v665, %v674
  %v679 = vmul.f32 %v665, %v675
  %v680 = vadd.f32 %v662, %v678
  %v681 = vadd.f32 %v663, %v679
  %v682 = vld [vmem:[%s1 + $0x23] sm:$0x1]
  %v683 = vperm.slane %v682, 0
  %684 = vrot.lane.b32.xlu0 %v442, 62
  %v685 = vpop.permute.xlu0 %684
  %686 = vrot.lane.b32.xlu0 %v445, 62
  %v687 = vpop.permute.xlu0 %686
  %688 = vrot.lane.b32.xlu0 %v447, 62
  %v689 = vpop.permute.xlu0 %688
  %690 = vrot.lane.b32.xlu0 %v449, 62
  %v691 = vpop.permute.xlu0 %690
  %v692 = vsel %vm289, %v685, %v687
  %v693 = vsel %vm289, %v689, %v691
  %v696 = vmul.f32 %v683, %v692
  %v697 = vmul.f32 %v683, %v693
  %v698 = vadd.f32 %v680, %v696
  %v699 = vadd.f32 %v681, %v697
  %v700 = vld [vmem:[%s1 + $0x24] sm:$0x1]
  %v701 = vperm.slane %v700, 0
  %702 = vrot.lane.b32.xlu0 %v442, 48
  %v703 = vpop.permute.xlu0 %702
  %704 = vrot.lane.b32.xlu0 %v445, 48
  %v705 = vpop.permute.xlu0 %704
  %706 = vrot.lane.b32.xlu0 %v447, 48
  %v707 = vpop.permute.xlu0 %706
  %708 = vrot.lane.b32.xlu0 %v449, 48
  %v709 = vpop.permute.xlu0 %708
  %v710 = vsel %vm308, %v703, %v705
  %v711 = vsel %vm308, %v707, %v709
  %v714 = vmul.f32 %v701, %v710
  %v715 = vmul.f32 %v701, %v711
  %v716 = vadd.f32 %v698, %v714
  %v717 = vadd.f32 %v699, %v715
  %v718 = vld [vmem:[%s1 + $0x25] sm:$0x1]
  %v719 = vperm.slane %v718, 0
  %720 = vrot.lane.b32.xlu0 %v442, 47
  %v721 = vpop.permute.xlu0 %720
  %722 = vrot.lane.b32.xlu0 %v445, 47
  %v723 = vpop.permute.xlu0 %722
  %724 = vrot.lane.b32.xlu0 %v447, 47
  %v725 = vpop.permute.xlu0 %724
  %726 = vrot.lane.b32.xlu0 %v449, 47
  %v727 = vpop.permute.xlu0 %726
  %v728 = vsel %vm327, %v721, %v723
  %v729 = vsel %vm327, %v725, %v727
  %v732 = vmul.f32 %v719, %v728
  %v733 = vmul.f32 %v719, %v729
  %v734 = vadd.f32 %v716, %v732
  %v735 = vadd.f32 %v717, %v733
  %v736 = vld [vmem:[%s1 + $0x26] sm:$0x1]
  %v737 = vperm.slane %v736, 0
  %738 = vrot.lane.b32.xlu0 %v442, 46
  %v739 = vpop.permute.xlu0 %738
  %740 = vrot.lane.b32.xlu0 %v445, 46
  %v741 = vpop.permute.xlu0 %740
  %742 = vrot.lane.b32.xlu0 %v447, 46
  %v743 = vpop.permute.xlu0 %742
  %744 = vrot.lane.b32.xlu0 %v449, 46
  %v745 = vpop.permute.xlu0 %744
  %v746 = vsel %vm346, %v739, %v741
  %v747 = vsel %vm346, %v743, %v745
  %v750 = vmul.f32 %v737, %v746
  %v751 = vmul.f32 %v737, %v747
  %v752 = vadd.f32 %v734, %v750
  %v753 = vadd.f32 %v735, %v751
  %v754 = vld [vmem:[%s1 + $0x27] sm:$0x1]
  %v755 = vperm.slane %v754, 0
  %756 = vrot.lane.b32.xlu0 %v442, 32
  %v757 = vpop.permute.xlu0 %756
  %758 = vrot.lane.b32.xlu0 %v445, 32
  %v759 = vpop.permute.xlu0 %758
  %760 = vrot.lane.b32.xlu0 %v447, 32
  %v761 = vpop.permute.xlu0 %760
  %762 = vrot.lane.b32.xlu0 %v449, 32
  %v763 = vpop.permute.xlu0 %762
  %v764 = vsel %vm365, %v757, %v759
  %v765 = vsel %vm365, %v761, %v763
  %v768 = vmul.f32 %v755, %v764
  %v769 = vmul.f32 %v755, %v765
  %v770 = vadd.f32 %v752, %v768
  %v771 = vadd.f32 %v753, %v769
  %v772 = vld [vmem:[%s1 + $0x28] sm:$0x1]
  %v773 = vperm.slane %v772, 0
  %774 = vrot.lane.b32.xlu0 %v442, 31
  %v775 = vpop.permute.xlu0 %774
  %776 = vrot.lane.b32.xlu0 %v445, 31
  %v777 = vpop.permute.xlu0 %776
  %778 = vrot.lane.b32.xlu0 %v447, 31
  %v779 = vpop.permute.xlu0 %778
  %780 = vrot.lane.b32.xlu0 %v449, 31
  %v781 = vpop.permute.xlu0 %780
  %v782 = vsel %vm384, %v775, %v777
  %v783 = vsel %vm384, %v779, %v781
  %v786 = vmul.f32 %v773, %v782
  %v787 = vmul.f32 %v773, %v783
  %v788 = vadd.f32 %v770, %v786
  %v789 = vadd.f32 %v771, %v787
  %v790 = vld [vmem:[%s1 + $0x29] sm:$0x1]
  %v791 = vperm.slane %v790, 0
  %792 = vrot.lane.b32.xlu0 %v442, 30
  %v793 = vpop.permute.xlu0 %792
  %794 = vrot.lane.b32.xlu0 %v445, 30
  %v795 = vpop.permute.xlu0 %794
  %796 = vrot.lane.b32.xlu0 %v447, 30
  %v797 = vpop.permute.xlu0 %796
  %798 = vrot.lane.b32.xlu0 %v449, 30
  %v799 = vpop.permute.xlu0 %798
  %v800 = vsel %vm403, %v793, %v795
  %v801 = vsel %vm403, %v797, %v799
  %v804 = vmul.f32 %v791, %v800
  %v805 = vmul.f32 %v791, %v801
  %v806 = vadd.f32 %v788, %v804
  %v807 = vadd.f32 %v789, %v805
  %v808 = vld [vmem:[%s0] sm:$0xfc]
  %v809 = vld [vmem:[%s0 + $0x20] sm:$0x3]
  %v810 = vld [vmem:[%s1 + $0x2a] sm:$0x1]
  %v811 = vperm.slane %v810, 0
  %v812 = vmul.f32 %v811, %v808
  %v813 = vmul.f32 %v811, %v16
  %v814 = vmul.f32 %v811, %v809
  %vm818 = vcmask 1045504
  %v819 = vrot.slane %v812, 2
  %v820 = vrot.slane %v813, 2
  %v821 = vsel %vm818, %v819, %v820
  %v822 = vrot.slane %v814, 2
  %v823 = vsel %vm818, %v820, %v822
  %v826 = vadd.f32 %v806, %v821
  %v827 = vadd.f32 %v807, %v823
  %v828 = vld [vmem:[%s0 + $0x8] sm:$0xfc]
  %v829 = vld [vmem:[%s0 + $0x28] sm:$0x3]
  %v830 = vld [vmem:[%s1 + $0x2b] sm:$0x1]
  %v831 = vperm.slane %v830, 0
  %v836 = vrot.slane %v808, 2
  %v837 = vrot.slane %v16, 2
  %v838 = vsel %vm818, %v836, %v837
  %v839 = vrot.slane %v828, 2
  %v840 = vrot.slane %v27, 2
  %v841 = vsel %vm818, %v839, %v840
  %v842 = vrot.slane %v809, 2
  %v843 = vsel %vm818, %v837, %v842
  %v844 = vrot.slane %v829, 2
  %v845 = vsel %vm818, %v840, %v844
  %846 = vrot.lane.b32.xlu0 %v838, 127
  %v847 = vpop.permute.xlu0 %846
  %848 = vrot.lane.b32.xlu0 %v841, 127
  %v849 = vpop.permute.xlu0 %848
  %850 = vrot.lane.b32.xlu0 %v843, 127
  %v851 = vpop.permute.xlu0 %850
  %852 = vrot.lane.b32.xlu0 %v845, 127
  %v853 = vpop.permute.xlu0 %852
  %v854 = vsel %vm42, %v847, %v849
  %v855 = vsel %vm42, %v851, %v853
  %v858 = vmul.f32 %v831, %v854
  %v859 = vmul.f32 %v831, %v855
  %v860 = vadd.f32 %v826, %v858
  %v861 = vadd.f32 %v827, %v859
  %v862 = vld [vmem:[%s1 + $0x2c] sm:$0x1]
  %v863 = vperm.slane %v862, 0
  %864 = vrot.lane.b32.xlu0 %v838, 126
  %v865 = vpop.permute.xlu0 %864
  %866 = vrot.lane.b32.xlu0 %v841, 126
  %v867 = vpop.permute.xlu0 %866
  %868 = vrot.lane.b32.xlu0 %v843, 126
  %v869 = vpop.permute.xlu0 %868
  %870 = vrot.lane.b32.xlu0 %v845, 126
  %v871 = vpop.permute.xlu0 %870
  %v872 = vsel %vm61, %v865, %v867
  %v873 = vsel %vm61, %v869, %v871
  %v876 = vmul.f32 %v863, %v872
  %v877 = vmul.f32 %v863, %v873
  %v878 = vadd.f32 %v860, %v876
  %v879 = vadd.f32 %v861, %v877
  %v880 = vld [vmem:[%s1 + $0x2d] sm:$0x1]
  %v881 = vperm.slane %v880, 0
  %882 = vrot.lane.b32.xlu0 %v838, 112
  %v883 = vpop.permute.xlu0 %882
  %884 = vrot.lane.b32.xlu0 %v841, 112
  %v885 = vpop.permute.xlu0 %884
  %886 = vrot.lane.b32.xlu0 %v843, 112
  %v887 = vpop.permute.xlu0 %886
  %888 = vrot.lane.b32.xlu0 %v845, 112
  %v889 = vpop.permute.xlu0 %888
  %v890 = vsel %vm80, %v883, %v885
  %v891 = vsel %vm80, %v887, %v889
  %v894 = vmul.f32 %v881, %v890
  %v895 = vmul.f32 %v881, %v891
  %v896 = vadd.f32 %v878, %v894
  %v897 = vadd.f32 %v879, %v895
  %v898 = vld [vmem:[%s1 + $0x2e] sm:$0x1]
  %v899 = vperm.slane %v898, 0
  %900 = vrot.lane.b32.xlu0 %v838, 111
  %v901 = vpop.permute.xlu0 %900
  %902 = vrot.lane.b32.xlu0 %v841, 111
  %v903 = vpop.permute.xlu0 %902
  %904 = vrot.lane.b32.xlu0 %v843, 111
  %v905 = vpop.permute.xlu0 %904
  %906 = vrot.lane.b32.xlu0 %v845, 111
  %v907 = vpop.permute.xlu0 %906
  %v908 = vsel %vm99, %v901, %v903
  %v909 = vsel %vm99, %v905, %v907
  %v912 = vmul.f32 %v899, %v908
  %v913 = vmul.f32 %v899, %v909
  %v914 = vadd.f32 %v896, %v912
  %v915 = vadd.f32 %v897, %v913
  %v916 = vld [vmem:[%s1 + $0x2f] sm:$0x1]
  %v917 = vperm.slane %v916, 0
  %918 = vrot.lane.b32.xlu0 %v838, 110
  %v919 = vpop.permute.xlu0 %918
  %920 = vrot.lane.b32.xlu0 %v841, 110
  %v921 = vpop.permute.xlu0 %920
  %922 = vrot.lane.b32.xlu0 %v843, 110
  %v923 = vpop.permute.xlu0 %922
  %924 = vrot.lane.b32.xlu0 %v845, 110
  %v925 = vpop.permute.xlu0 %924
  %v926 = vsel %vm118, %v919, %v921
  %v927 = vsel %vm118, %v923, %v925
  %v930 = vmul.f32 %v917, %v926
  %v931 = vmul.f32 %v917, %v927
  %v932 = vadd.f32 %v914, %v930
  %v933 = vadd.f32 %v915, %v931
  %v934 = vld [vmem:[%s1 + $0x30] sm:$0x1]
  %v935 = vperm.slane %v934, 0
  %936 = vrot.lane.b32.xlu0 %v838, 96
  %v937 = vpop.permute.xlu0 %936
  %938 = vrot.lane.b32.xlu0 %v841, 96
  %v939 = vpop.permute.xlu0 %938
  %940 = vrot.lane.b32.xlu0 %v843, 96
  %v941 = vpop.permute.xlu0 %940
  %942 = vrot.lane.b32.xlu0 %v845, 96
  %v943 = vpop.permute.xlu0 %942
  %v944 = vsel %vm137, %v937, %v939
  %v945 = vsel %vm137, %v941, %v943
  %v948 = vmul.f32 %v935, %v944
  %v949 = vmul.f32 %v935, %v945
  %v950 = vadd.f32 %v932, %v948
  %v951 = vadd.f32 %v933, %v949
  %v952 = vld [vmem:[%s1 + $0x31] sm:$0x1]
  %v953 = vperm.slane %v952, 0
  %954 = vrot.lane.b32.xlu0 %v838, 95
  %v955 = vpop.permute.xlu0 %954
  %956 = vrot.lane.b32.xlu0 %v841, 95
  %v957 = vpop.permute.xlu0 %956
  %958 = vrot.lane.b32.xlu0 %v843, 95
  %v959 = vpop.permute.xlu0 %958
  %960 = vrot.lane.b32.xlu0 %v845, 95
  %v961 = vpop.permute.xlu0 %960
  %v962 = vsel %vm156, %v955, %v957
  %v963 = vsel %vm156, %v959, %v961
  %v966 = vmul.f32 %v953, %v962
  %v967 = vmul.f32 %v953, %v963
  %v968 = vadd.f32 %v950, %v966
  %v969 = vadd.f32 %v951, %v967
  %v970 = vld [vmem:[%s1 + $0x32] sm:$0x1]
  %v971 = vperm.slane %v970, 0
  %972 = vrot.lane.b32.xlu0 %v838, 94
  %v973 = vpop.permute.xlu0 %972
  %974 = vrot.lane.b32.xlu0 %v841, 94
  %v975 = vpop.permute.xlu0 %974
  %976 = vrot.lane.b32.xlu0 %v843, 94
  %v977 = vpop.permute.xlu0 %976
  %978 = vrot.lane.b32.xlu0 %v845, 94
  %v979 = vpop.permute.xlu0 %978
  %v980 = vsel %vm175, %v973, %v975
  %v981 = vsel %vm175, %v977, %v979
  %v984 = vmul.f32 %v971, %v980
  %v985 = vmul.f32 %v971, %v981
  %v986 = vadd.f32 %v968, %v984
  %v987 = vadd.f32 %v969, %v985
  %v988 = vld [vmem:[%s1 + $0x33] sm:$0x1]
  %v989 = vperm.slane %v988, 0
  %990 = vrot.lane.b32.xlu0 %v838, 80
  %v991 = vpop.permute.xlu0 %990
  %992 = vrot.lane.b32.xlu0 %v841, 80
  %v993 = vpop.permute.xlu0 %992
  %994 = vrot.lane.b32.xlu0 %v843, 80
  %v995 = vpop.permute.xlu0 %994
  %996 = vrot.lane.b32.xlu0 %v845, 80
  %v997 = vpop.permute.xlu0 %996
  %v998 = vsel %vm194, %v991, %v993
  %v999 = vsel %vm194, %v995, %v997
  %v1002 = vmul.f32 %v989, %v998
  %v1003 = vmul.f32 %v989, %v999
  %v1004 = vadd.f32 %v986, %v1002
  %v1005 = vadd.f32 %v987, %v1003
  %v1006 = vld [vmem:[%s1 + $0x34] sm:$0x1]
  %v1007 = vperm.slane %v1006, 0
  %1008 = vrot.lane.b32.xlu0 %v838, 79
  %v1009 = vpop.permute.xlu0 %1008
  %1010 = vrot.lane.b32.xlu0 %v841, 79
  %v1011 = vpop.permute.xlu0 %1010
  %1012 = vrot.lane.b32.xlu0 %v843, 79
  %v1013 = vpop.permute.xlu0 %1012
  %1014 = vrot.lane.b32.xlu0 %v845, 79
  %v1015 = vpop.permute.xlu0 %1014
  %v1016 = vsel %vm213, %v1009, %v1011
  %v1017 = vsel %vm213, %v1013, %v1015
  %v1020 = vmul.f32 %v1007, %v1016
  %v1021 = vmul.f32 %v1007, %v1017
  %v1022 = vadd.f32 %v1004, %v1020
  %v1023 = vadd.f32 %v1005, %v1021
  %v1024 = vld [vmem:[%s1 + $0x35] sm:$0x1]
  %v1025 = vperm.slane %v1024, 0
  %1026 = vrot.lane.b32.xlu0 %v838, 78
  %v1027 = vpop.permute.xlu0 %1026
  %1028 = vrot.lane.b32.xlu0 %v841, 78
  %v1029 = vpop.permute.xlu0 %1028
  %1030 = vrot.lane.b32.xlu0 %v843, 78
  %v1031 = vpop.permute.xlu0 %1030
  %1032 = vrot.lane.b32.xlu0 %v845, 78
  %v1033 = vpop.permute.xlu0 %1032
  %v1034 = vsel %vm232, %v1027, %v1029
  %v1035 = vsel %vm232, %v1031, %v1033
  %v1038 = vmul.f32 %v1025, %v1034
  %v1039 = vmul.f32 %v1025, %v1035
  %v1040 = vadd.f32 %v1022, %v1038
  %v1041 = vadd.f32 %v1023, %v1039
  %v1042 = vld [vmem:[%s1 + $0x36] sm:$0x1]
  %v1043 = vperm.slane %v1042, 0
  %1044 = vrot.lane.b32.xlu0 %v838, 64
  %v1045 = vpop.permute.xlu0 %1044
  %1046 = vrot.lane.b32.xlu0 %v841, 64
  %v1047 = vpop.permute.xlu0 %1046
  %1048 = vrot.lane.b32.xlu0 %v843, 64
  %v1049 = vpop.permute.xlu0 %1048
  %1050 = vrot.lane.b32.xlu0 %v845, 64
  %v1051 = vpop.permute.xlu0 %1050
  %v1052 = vsel %vm251, %v1045, %v1047
  %v1053 = vsel %vm251, %v1049, %v1051
  %v1056 = vmul.f32 %v1043, %v1052
  %v1057 = vmul.f32 %v1043, %v1053
  %v1058 = vadd.f32 %v1040, %v1056
  %v1059 = vadd.f32 %v1041, %v1057
  %v1060 = vld [vmem:[%s1 + $0x37] sm:$0x1]
  %v1061 = vperm.slane %v1060, 0
  %1062 = vrot.lane.b32.xlu0 %v838, 63
  %v1063 = vpop.permute.xlu0 %1062
  %1064 = vrot.lane.b32.xlu0 %v841, 63
  %v1065 = vpop.permute.xlu0 %1064
  %1066 = vrot.lane.b32.xlu0 %v843, 63
  %v1067 = vpop.permute.xlu0 %1066
  %1068 = vrot.lane.b32.xlu0 %v845, 63
  %v1069 = vpop.permute.xlu0 %1068
  %v1070 = vsel %vm270, %v1063, %v1065
  %v1071 = vsel %vm270, %v1067, %v1069
  %v1074 = vmul.f32 %v1061, %v1070
  %v1075 = vmul.f32 %v1061, %v1071
  %v1076 = vadd.f32 %v1058, %v1074
  %v1077 = vadd.f32 %v1059, %v1075
  %v1078 = vld [vmem:[%s1 + $0x38] sm:$0x1]
  %v1079 = vperm.slane %v1078, 0
  %1080 = vrot.lane.b32.xlu0 %v838, 62
  %v1081 = vpop.permute.xlu0 %1080
  %1082 = vrot.lane.b32.xlu0 %v841, 62
  %v1083 = vpop.permute.xlu0 %1082
  %1084 = vrot.lane.b32.xlu0 %v843, 62
  %v1085 = vpop.permute.xlu0 %1084
  %1086 = vrot.lane.b32.xlu0 %v845, 62
  %v1087 = vpop.permute.xlu0 %1086
  %v1088 = vsel %vm289, %v1081, %v1083
  %v1089 = vsel %vm289, %v1085, %v1087
  %v1092 = vmul.f32 %v1079, %v1088
  %v1093 = vmul.f32 %v1079, %v1089
  %v1094 = vadd.f32 %v1076, %v1092
  %v1095 = vadd.f32 %v1077, %v1093
  %v1096 = vld [vmem:[%s1 + $0x39] sm:$0x1]
  %v1097 = vperm.slane %v1096, 0
  %1098 = vrot.lane.b32.xlu0 %v838, 48
  %v1099 = vpop.permute.xlu0 %1098
  %1100 = vrot.lane.b32.xlu0 %v841, 48
  %v1101 = vpop.permute.xlu0 %1100
  %1102 = vrot.lane.b32.xlu0 %v843, 48
  %v1103 = vpop.permute.xlu0 %1102
  %1104 = vrot.lane.b32.xlu0 %v845, 48
  %v1105 = vpop.permute.xlu0 %1104
  %v1106 = vsel %vm308, %v1099, %v1101
  %v1107 = vsel %vm308, %v1103, %v1105
  %v1110 = vmul.f32 %v1097, %v1106
  %v1111 = vmul.f32 %v1097, %v1107
  %v1112 = vadd.f32 %v1094, %v1110
  %v1113 = vadd.f32 %v1095, %v1111
  %v1114 = vld [vmem:[%s1 + $0x3a] sm:$0x1]
  %v1115 = vperm.slane %v1114, 0
  %1116 = vrot.lane.b32.xlu0 %v838, 47
  %v1117 = vpop.permute.xlu0 %1116
  %1118 = vrot.lane.b32.xlu0 %v841, 47
  %v1119 = vpop.permute.xlu0 %1118
  %1120 = vrot.lane.b32.xlu0 %v843, 47
  %v1121 = vpop.permute.xlu0 %1120
  %1122 = vrot.lane.b32.xlu0 %v845, 47
  %v1123 = vpop.permute.xlu0 %1122
  %v1124 = vsel %vm327, %v1117, %v1119
  %v1125 = vsel %vm327, %v1121, %v1123
  %v1128 = vmul.f32 %v1115, %v1124
  %v1129 = vmul.f32 %v1115, %v1125
  %v1130 = vadd.f32 %v1112, %v1128
  %v1131 = vadd.f32 %v1113, %v1129
  %v1132 = vld [vmem:[%s1 + $0x3b] sm:$0x1]
  %v1133 = vperm.slane %v1132, 0
  %1134 = vrot.lane.b32.xlu0 %v838, 46
  %v1135 = vpop.permute.xlu0 %1134
  %1136 = vrot.lane.b32.xlu0 %v841, 46
  %v1137 = vpop.permute.xlu0 %1136
  %1138 = vrot.lane.b32.xlu0 %v843, 46
  %v1139 = vpop.permute.xlu0 %1138
  %1140 = vrot.lane.b32.xlu0 %v845, 46
  %v1141 = vpop.permute.xlu0 %1140
  %v1142 = vsel %vm346, %v1135, %v1137
  %v1143 = vsel %vm346, %v1139, %v1141
  %v1146 = vmul.f32 %v1133, %v1142
  %v1147 = vmul.f32 %v1133, %v1143
  %v1148 = vadd.f32 %v1130, %v1146
  %v1149 = vadd.f32 %v1131, %v1147
  %v1150 = vld [vmem:[%s1 + $0x3c] sm:$0x1]
  %v1151 = vperm.slane %v1150, 0
  %1152 = vrot.lane.b32.xlu0 %v838, 32
  %v1153 = vpop.permute.xlu0 %1152
  %1154 = vrot.lane.b32.xlu0 %v841, 32
  %v1155 = vpop.permute.xlu0 %1154
  %1156 = vrot.lane.b32.xlu0 %v843, 32
  %v1157 = vpop.permute.xlu0 %1156
  %1158 = vrot.lane.b32.xlu0 %v845, 32
  %v1159 = vpop.permute.xlu0 %1158
  %v1160 = vsel %vm365, %v1153, %v1155
  %v1161 = vsel %vm365, %v1157, %v1159
  %v1164 = vmul.f32 %v1151, %v1160
  %v1165 = vmul.f32 %v1151, %v1161
  %v1166 = vadd.f32 %v1148, %v1164
  %v1167 = vadd.f32 %v1149, %v1165
  %v1168 = vld [vmem:[%s1 + $0x3d] sm:$0x1]
  %v1169 = vperm.slane %v1168, 0
  %1170 = vrot.lane.b32.xlu0 %v838, 31
  %v1171 = vpop.permute.xlu0 %1170
  %1172 = vrot.lane.b32.xlu0 %v841, 31
  %v1173 = vpop.permute.xlu0 %1172
  %1174 = vrot.lane.b32.xlu0 %v843, 31
  %v1175 = vpop.permute.xlu0 %1174
  %1176 = vrot.lane.b32.xlu0 %v845, 31
  %v1177 = vpop.permute.xlu0 %1176
  %v1178 = vsel %vm384, %v1171, %v1173
  %v1179 = vsel %vm384, %v1175, %v1177
  %v1182 = vmul.f32 %v1169, %v1178
  %v1183 = vmul.f32 %v1169, %v1179
  %v1184 = vadd.f32 %v1166, %v1182
  %v1185 = vadd.f32 %v1167, %v1183
  %v1186 = vld [vmem:[%s1 + $0x3e] sm:$0x1]
  %v1187 = vperm.slane %v1186, 0
  %1188 = vrot.lane.b32.xlu0 %v838, 30
  %v1189 = vpop.permute.xlu0 %1188
  %1190 = vrot.lane.b32.xlu0 %v841, 30
  %v1191 = vpop.permute.xlu0 %1190
  %1192 = vrot.lane.b32.xlu0 %v843, 30
  %v1193 = vpop.permute.xlu0 %1192
  %1194 = vrot.lane.b32.xlu0 %v845, 30
  %v1195 = vpop.permute.xlu0 %1194
  %v1196 = vsel %vm403, %v1189, %v1191
  %v1197 = vsel %vm403, %v1193, %v1195
  %v1200 = vmul.f32 %v1187, %v1196
  %v1201 = vmul.f32 %v1187, %v1197
  %v1202 = vadd.f32 %v1184, %v1200
  %v1203 = vadd.f32 %v1185, %v1201
  %v1204 = vmax.f32 %v1202, %v1203
  %v1205 = vrot.slane %v1204, 4
  %v1206 = vmax.f32 %v1204, %v1205
  %v1207 = vrot.slane %v1206, 2
  %v1208 = vmax.f32 %v1206, %v1207
  %v1209 = vrot.slane %v1208, 1
  %v1210 = vmax.f32 %v1208, %v1209
  %v1211 = vsub.f32 %v1202, %v1210
  %v1212 = vsub.f32 %v1203, %v1210
  %v1213 = vmul.f32 %v1211, 1.442695
  %v1214 = vpow.pop %v1213
  %v1215 = vmul.f32 %v1212, 1.442695
  %v1216 = vpow.pop %v1215
  %v1217 = vadd.f32 %v1214, %v1216
  %v1218 = vrot.slane %v1217, 4
  %v1219 = vadd.f32 %v1217, %v1218
  %v1220 = vrot.slane %v1219, 2
  %v1221 = vadd.f32 %v1219, %v1220
  %v1222 = vrot.slane %v1221, 1
  %v1223 = vadd.f32 %v1221, %v1222
  %v1224 = vrcp.pop %v1223
  %v1225 = vmul.f32 %v1223, %v1224
  %v1226 = vsub.f32 2.0, %v1225
  %v1227 = vmul.f32 %v1224, %v1226
  %v1228 = vmul.f32 %v1214, %v1227
  %v1229 = vmul.f32 %v1216, %v1227
  %v1230 = vmul.f32 %v1228, %v620
  %v1231 = vmul.f32 %v1229, %v621
  %1232 = vst [vmem:[%s3] sm:$0xff] %v1230
  %1233 = vst [vmem:[%s3 + $0x8] sm:$0xff] %v1231
  // Predicated region
  $region14: #{attention1_forward.1} parent=0 // pred_check
    _
  $region15: #{attention1_forward.1} parent=0 // pred_check_branch
    %1235 = sbr.rel (0) target = $region17
  $region16: #{attention1_forward.1} parent=0 // pred_region
    _
  $region17: #{attention1_forward.1} parent=0 // pred_fallthru
    _
  // Predicated region
  $region18: #{attention1_forward.1} parent=0 // pred_check
    _
  $region19: #{attention1_forward.1} parent=0 // pred_check_branch
    %1237 = sbr.rel (0) target = $region21
  $region20: #{attention1_forward.1} parent=0 // pred_region
    _
  $region21: #{attention1_forward.1} parent=0 // pred_fallthru
    _

</llo_original>
